<compile_context>
chip_gen: v7x
topology: tpu7x:2x2x1
jax: 0.10.0
libtpu: 0.0.40
codegen_flags: <defaults>
</compile_context>

<pallas_src>
import functools

import jax
import jax.numpy as jnp
from jax.experimental import pallas as pl
from jax.experimental.pallas import tpu as pltpu


def lstm_model_kernel(x_ref, wih0_ref, b0_ref, whh0_ref, wih1_ref, whh1_ref,
                      b1_ref, wout_ref, bout_ref, out_ref, xp_ref, *,
                      hidden_dim, t_chunk, unrolled):
    H = hidden_dim
    T, B, D = x_ref.shape                     # (T, block_b, D), time-major block

    # --- Hoisted layer-0 input projection, computed in time chunks into VMEM scratch.
    #     Bias b0 folded in.  Chunking bounds the live (tc*B, 4H) intermediate.
    wih0 = wih0_ref[...]                      # (D, 4H)
    b0 = b0_ref[...]                          # (1, 4H)
    for t0 in range(0, T, t_chunk):           # static python loop (few iterations)
        tc = min(t_chunk, T - t0)
        xc = x_ref[pl.ds(t0, tc)]             # (tc, B, D)
        g = jnp.dot(xc.reshape(tc * B, D), wih0,
                    preferred_element_type=jnp.float32) + b0
        xp_ref[pl.ds(t0, tc)] = g.reshape(tc, B, 4 * H)

    whh0 = whh0_ref[...]                      # (H, 4H) recurrent, layer 0
    wih1 = wih1_ref[...]                      # (H, 4H) input,     layer 1
    whh1 = whh1_ref[...]                      # (H, 4H) recurrent, layer 1
    b1 = jnp.broadcast_to(b1_ref[...], (B, 4 * H))   # hoisted bias broadcast

    def activate(gates, c):
        # packed gate order [i, f, o, g]: sigmoids contiguous -> 2 EUP calls per cell
        sig = jax.nn.sigmoid(gates[:, :3 * H])
        g = jnp.tanh(gates[:, 3 * H:])
        i, f, o = sig[:, :H], sig[:, H:2 * H], sig[:, 2 * H:3 * H]
        c_new = f * c + i * g
        return o * jnp.tanh(c_new), c_new

    def step(t, carry):
        h0, c0, h1, c1 = carry
        # layer-1 recurrent matmul only needs the PREVIOUS h1 -> can issue on the MXU
        # while layer-0's activation (VPU/EUP) is still in flight.
        g1_rec = jnp.dot(h1, whh1, preferred_element_type=jnp.float32)
        g0 = xp_ref[t] + jnp.dot(h0, whh0, preferred_element_type=jnp.float32)
        h0, c0 = activate(g0, c0)
        g1 = jnp.dot(h0, wih1, preferred_element_type=jnp.float32) + g1_rec + b1
        h1, c1 = activate(g1, c1)
        return h0, c0, h1, c1

    zeros = jnp.zeros((B, H), jnp.float32)
    carry = (zeros, zeros, zeros, zeros)
    if unrolled:                              # T small: full static unroll
        for t in range(T):
            carry = step(t, carry)
    else:                                     # T large: bounded live ranges
        carry = jax.lax.fori_loop(0, T, step, carry, unroll=4)
    h1 = carry[2]

    # out[:, -1, :] == h1; dropout identity (eval); fc->fc2 folded at init.
    y = jnp.dot(h1, wout_ref[...], preferred_element_type=jnp.float32) + bout_ref[...]
    out_ref[...] = y.astype(out_ref.dtype)


def _choose_block_b(B, T, H, xp_budget_bytes=24 << 20):
    """Batch rows per grid step: big enough to feed the MXU, small enough for VMEM,
    and (when B is large) >= 2 grid steps so v7x megacore shards across both TCs."""
    b8 = ((B + 7) // 8) * 8
    per_row = T * 4 * H * 4                    # xp bytes per batch row (f32)
    cap = max(8, (xp_budget_bytes // per_row) // 8 * 8)
    block_b = min(256, b8, cap)
    if b8 >= 16 and block_b >= b8:             # force >= 2 parallel grid steps
        block_b = max(8, ((b8 // 2) // 8) * 8)
    return block_b


def lstm_model_forward(x, params, hidden_dim, output_dim, *, block_b=None):
    B, T, D = x.shape
    H = hidden_dim
    if block_b is None:
        block_b = _choose_block_b(B, T, H)
    b_pad = ((B + block_b - 1) // block_b) * block_b
    if b_pad != B:
        x = jnp.pad(x, ((0, b_pad - B), (0, 0), (0, 0)))   # explicit sublane padding
    nb = b_pad // block_b
    # Pre-block outside the kernel: each grid step reads one contiguous (T, block_b, D)
    # time-major slab from HBM (layout plumbing, not compute).
    x_blk = x.reshape(nb, block_b, T, D).transpose(0, 2, 1, 3)   # (nb, T, block_b, D)

    weights = (params["wih0"], params["b0"], params["whh0"], params["wih1"],
               params["whh1"], params["b1"], params["wout"], params["bout"])
    w_specs = [pl.BlockSpec(w.shape, lambda i: (0, 0)) for w in weights]

    unrolled = T <= 32
    t_chunk = min(T, 128)

    # VMEM budget: xp scratch + double-buffered x block + weights + margin, clamped
    # below v7x's 64 MiB physical ceiling (generous on v5e/v6e's 128 MiB).
    xp_bytes = T * block_b * 4 * H * 4
    x_bytes = 2 * T * block_b * D * 4
    w_bytes = 2 * sum(int(w.size) * 4 for w in weights)
    vmem_limit = max(32 << 20,
                     min(int(1.5 * (xp_bytes + x_bytes + w_bytes)) + (4 << 20), 56 << 20))

    out = pl.pallas_call(
        functools.partial(lstm_model_kernel, hidden_dim=H,
                          t_chunk=t_chunk, unrolled=unrolled),
        out_shape=jax.ShapeDtypeStruct((b_pad, output_dim), jnp.float32),
        grid=(nb,),
        in_specs=[pl.BlockSpec((pl.Squeezed(), T, block_b, D),
                               lambda i: (i, 0, 0, 0))] + w_specs,
        out_specs=pl.BlockSpec((block_b, output_dim), lambda i: (i, 0)),
        scratch_shapes=[pltpu.VMEM((T, block_b, 4 * H), jnp.float32)],
        compiler_params=pltpu.CompilerParams(
            dimension_semantics=("parallel",),
            vmem_limit_bytes=vmem_limit),
    )(x_blk, *weights)
    return out[:B]


def init_raw_params(key, input_dim, hidden_dim, output_dim):
    """PyTorch-layout weights, PyTorch gate order [i, f, g, o]."""
    H = hidden_dim
    k = 1.0 / jnp.sqrt(jnp.float32(H))
    keys = jax.random.split(key, 14)

    def u(k_, shape, bound):
        return jax.random.uniform(k_, shape, jnp.float32, -bound, bound)

    kf2 = 1.0 / jnp.sqrt(jnp.float32(25))
    return {
        "w_ih0": u(keys[0], (4 * H, input_dim), k),
        "w_hh0": u(keys[1], (4 * H, H), k),
        "b_ih0": u(keys[2], (4 * H,), k),
        "b_hh0": u(keys[3], (4 * H,), k),
        "w_ih1": u(keys[4], (4 * H, H), k),
        "w_hh1": u(keys[5], (4 * H, H), k),
        "b_ih1": u(keys[6], (4 * H,), k),
        "b_hh1": u(keys[7], (4 * H,), k),
        "fc_w": u(keys[8], (25, H), k),
        "fc_b": u(keys[9], (25,), k),
        "fc2_w": u(keys[10], (output_dim, 25), kf2),
        "fc2_b": u(keys[11], (output_dim,), kf2),
    }


def pack_params(raw, hidden_dim):
    """Transpose, permute gates to [i,f,o,g], keep layer-1 weights separate, fold fc->fc2."""
    H = hidden_dim
    perm = jnp.concatenate([jnp.arange(0, H), jnp.arange(H, 2 * H),
                            jnp.arange(3 * H, 4 * H), jnp.arange(2 * H, 3 * H)])

    def pt(w):                      # permute PyTorch gate-rows, then transpose
        return w[perm].T

    wih0 = pt(raw["w_ih0"])                                   # (D, 4H)
    whh0 = pt(raw["w_hh0"])                                   # (H, 4H)
    b0 = (raw["b_ih0"] + raw["b_hh0"])[perm][None, :]         # (1, 4H)
    wih1 = pt(raw["w_ih1"])                                   # (H, 4H)  (un-fused)
    whh1 = pt(raw["w_hh1"])                                   # (H, 4H)
    b1 = (raw["b_ih1"] + raw["b_hh1"])[perm][None, :]         # (1, 4H)
    # fc -> fc2 fold (exact: no activation between, dropout identity in eval).
    fcw_t, fc2w_t = raw["fc_w"].T, raw["fc2_w"].T             # (H,25), (25,OUT)
    wout = fcw_t @ fc2w_t                                     # (H, OUT)
    bout = (raw["fc_b"] @ fc2w_t + raw["fc2_b"])[None, :]     # (1, OUT)
    return {"wih0": wih0, "b0": b0, "whh0": whh0, "wih1": wih1, "whh1": whh1,
            "b1": b1, "wout": wout, "bout": bout}


def reference_forward(x, raw, H):
    """Pure-JAX reference of the PyTorch forward (eval mode), PyTorch gate order."""
    B, T, _ = x.shape

    def cell(x_t, h, c, wih, whh, b):
        g = x_t @ wih.T + h @ whh.T + b
        i, f = jax.nn.sigmoid(g[:, :H]), jax.nn.sigmoid(g[:, H:2 * H])
        gg, o = jnp.tanh(g[:, 2 * H:3 * H]), jax.nn.sigmoid(g[:, 3 * H:])
        c = f * c + i * gg
        return o * jnp.tanh(c), c

    h0 = c0 = h1 = c1 = jnp.zeros((B, H), jnp.float32)
    for t in range(T):
        h0, c0 = cell(x[:, t, :], h0, c0, raw["w_ih0"], raw["w_hh0"],
                      raw["b_ih0"] + raw["b_hh0"])
        h1, c1 = cell(h0, h1, c1, raw["w_ih1"], raw["w_hh1"],
                      raw["b_ih1"] + raw["b_hh1"])
    y = h1 @ raw["fc_w"].T + raw["fc_b"]
    return y @ raw["fc2_w"].T + raw["fc2_b"]


if __name__ == "__main__":
    B, T, D = 2, 8, 4          # batch, seq, input_dim
    H, OUT = 32, 1             # hidden_dim, output_dim

    key = jax.random.PRNGKey(0)
    kx, kp = jax.random.split(key)
    x = jax.random.normal(kx, (B, T, D), jnp.float32)

    raw = init_raw_params(kp, D, H, OUT)
    params = pack_params(raw, H)

    out = lstm_model_forward(x, params, H, OUT)
    out = jax.block_until_ready(out)

    ref = reference_forward(x, raw, H)
    assert out.shape == (B, OUT)
    assert jnp.allclose(out, ref, atol=1e-4, rtol=1e-4), (out, ref)
    print("KERNEL_OK")
</pallas_src>

<mosaic_0001>
module attributes {stable_mosaic.version = 11 : i64} {
  func.func @lstm_model_kernel(%arg0: i32, %arg1: memref<1x8x8x4xf32, #tpu.memory_space<vmem>>, %arg2: memref<4x128xf32, #tpu.memory_space<vmem>>, %arg3: memref<1x128xf32, #tpu.memory_space<vmem>>, %arg4: memref<32x128xf32, #tpu.memory_space<vmem>>, %arg5: memref<32x128xf32, #tpu.memory_space<vmem>>, %arg6: memref<32x128xf32, #tpu.memory_space<vmem>>, %arg7: memref<1x128xf32, #tpu.memory_space<vmem>>, %arg8: memref<32x1xf32, #tpu.memory_space<vmem>>, %arg9: memref<1x1xf32, #tpu.memory_space<vmem>>, %arg10: memref<8x1xf32, #tpu.memory_space<vmem>>, %arg11: memref<8x8x128xf32, #tpu.memory_space<vmem>>) attributes {dimension_semantics = [#tpu.dimension_semantics<parallel>], iteration_bounds = array<i64: 1>, scalar_prefetch = 0 : i64, scratch_operands = 1 : i64, tpu.core_type = #tpu.core_type<tc>, window_params = [{transform_indices = @transform_0, window_bounds = array<i64: 1, 8, 8, 4>}, {pipeline_mode = #tpu.pipeline_mode<synchronous>, transform_indices = @transform_1, window_bounds = array<i64: 4, 128>}, {pipeline_mode = #tpu.pipeline_mode<synchronous>, transform_indices = @transform_2, window_bounds = array<i64: 1, 128>}, {pipeline_mode = #tpu.pipeline_mode<synchronous>, transform_indices = @transform_3, window_bounds = array<i64: 32, 128>}, {pipeline_mode = #tpu.pipeline_mode<synchronous>, transform_indices = @transform_4, window_bounds = array<i64: 32, 128>}, {pipeline_mode = #tpu.pipeline_mode<synchronous>, transform_indices = @transform_5, window_bounds = array<i64: 32, 128>}, {pipeline_mode = #tpu.pipeline_mode<synchronous>, transform_indices = @transform_6, window_bounds = array<i64: 1, 128>}, {pipeline_mode = #tpu.pipeline_mode<synchronous>, transform_indices = @transform_7, window_bounds = array<i64: 32, 1>}, {pipeline_mode = #tpu.pipeline_mode<synchronous>, transform_indices = @transform_8, window_bounds = array<i64: 1, 1>}, {transform_indices = @transform_9, window_bounds = array<i64: 8, 1>}]} {
    %c0 = arith.constant 0 : index
    %c0_0 = arith.constant 0 : index
    %0 = vector.load %arg2[%c0, %c0_0] : memref<4x128xf32, #tpu.memory_space<vmem>>, vector<4x128xf32>
    %c0_1 = arith.constant 0 : index
    %c0_2 = arith.constant 0 : index
    %1 = vector.load %arg3[%c0_1, %c0_2] : memref<1x128xf32, #tpu.memory_space<vmem>>, vector<1x128xf32>
    %c0_3 = arith.constant 0 : index
    %c0_4 = arith.constant 0 : index
    %c0_5 = arith.constant 0 : index
    %c0_6 = arith.constant 0 : index
    %2 = vector.load %arg1[%c0_3, %c0_4, %c0_5, %c0_6] : memref<1x8x8x4xf32, #tpu.memory_space<vmem>>, vector<1x8x8x4xf32>
    %3 = vector.shape_cast %2 : vector<1x8x8x4xf32> to vector<8x8x4xf32>
    %4 = vector.shape_cast %3 : vector<8x8x4xf32> to vector<64x4xf32>
    %cst = arith.constant dense<0.000000e+00> : vector<64x128xf32>
    %5 = tpu.matmul %4, %0, %cst {dimension_numbers = #tpu.dot_dimension_numbers<[1], [0], [0], [1], [0, 0, 1, 1], [], []>} : vector<64x4xf32>, vector<4x128xf32>, vector<64x128xf32> -> vector<64x128xf32>
    %6 = vector.broadcast %1 : vector<1x128xf32> to vector<64x128xf32>
    %7 = arith.addf %5, %6 : vector<64x128xf32>
    %8 = vector.shape_cast %7 : vector<64x128xf32> to vector<8x8x128xf32>
    %c0_7 = arith.constant 0 : index
    %c0_8 = arith.constant 0 : index
    %c0_9 = arith.constant 0 : index
    %9 = vector.load %arg11[%c0_7, %c0_8, %c0_9] : memref<8x8x128xf32, #tpu.memory_space<vmem>>, vector<8x8x128xf32>
    tpu.vector_store %arg11[%c0_7, %c0_8, %c0_9], %8 {strides = array<i32>} : memref<8x8x128xf32, #tpu.memory_space<vmem>>, vector<8x8x128xf32>,
    %c0_10 = arith.constant 0 : index
    %c0_11 = arith.constant 0 : index
    %10 = vector.load %arg4[%c0_10, %c0_11] : memref<32x128xf32, #tpu.memory_space<vmem>>, vector<32x128xf32>
    %c0_12 = arith.constant 0 : index
    %c0_13 = arith.constant 0 : index
    %11 = vector.load %arg5[%c0_12, %c0_13] : memref<32x128xf32, #tpu.memory_space<vmem>>, vector<32x128xf32>
    %c0_14 = arith.constant 0 : index
    %c0_15 = arith.constant 0 : index
    %12 = vector.load %arg6[%c0_14, %c0_15] : memref<32x128xf32, #tpu.memory_space<vmem>>, vector<32x128xf32>
    %c0_16 = arith.constant 0 : index
    %c0_17 = arith.constant 0 : index
    %13 = vector.load %arg7[%c0_16, %c0_17] : memref<1x128xf32, #tpu.memory_space<vmem>>, vector<1x128xf32>
    %14 = vector.shape_cast %13 : vector<1x128xf32> to vector<1x128xf32>
    %15 = vector.broadcast %14 : vector<1x128xf32> to vector<8x128xf32>
    %cst_18 = arith.constant 0.000000e+00 : f32
    %16 = vector.broadcast %cst_18 : f32 to vector<8x32xf32>
    %cst_19 = arith.constant dense<0.000000e+00> : vector<8x128xf32>
    %17 = tpu.matmul %16, %12, %cst_19 {dimension_numbers = #tpu.dot_dimension_numbers<[1], [0], [0], [1], [0, 0, 1, 1], [], []>} : vector<8x32xf32>, vector<32x128xf32>, vector<8x128xf32> -> vector<8x128xf32>
    %c0_20 = arith.constant 0 : index
    %c0_21 = arith.constant 0 : index
    %c0_22 = arith.constant 0 : index
    %18 = vector.load %arg11[%c0_20, %c0_21, %c0_22] : memref<8x8x128xf32, #tpu.memory_space<vmem>>, vector<1x8x128xf32>
    %19 = vector.shape_cast %18 : vector<1x8x128xf32> to vector<8x128xf32>
    %cst_23 = arith.constant dense<0.000000e+00> : vector<8x128xf32>
    %20 = tpu.matmul %16, %10, %cst_23 {dimension_numbers = #tpu.dot_dimension_numbers<[1], [0], [0], [1], [0, 0, 1, 1], [], []>} : vector<8x32xf32>, vector<32x128xf32>, vector<8x128xf32> -> vector<8x128xf32>
    %21 = arith.addf %19, %20 : vector<8x128xf32>
    %22 = vector.extract_strided_slice %21 {offsets = [0, 0], sizes = [8, 96], strides = [1, 1]} : vector<8x128xf32> to vector<8x96xf32>
    %23 = arith.negf %22 : vector<8x96xf32>
    %24 = math.exp %23 : vector<8x96xf32>
    %cst_24 = arith.constant 1.000000e+00 : f32
    %25 = vector.broadcast %cst_24 : f32 to vector<8x96xf32>
    %26 = arith.addf %25, %24 : vector<8x96xf32>
    %27 = arith.divf %25, %26 : vector<8x96xf32>
    %28 = vector.extract_strided_slice %21 {offsets = [0, 96], sizes = [8, 32], strides = [1, 1]} : vector<8x128xf32> to vector<8x32xf32>
    %29 = math.tanh %28 : vector<8x32xf32>
    %30 = vector.extract_strided_slice %27 {offsets = [0, 0], sizes = [8, 32], strides = [1, 1]} : vector<8x96xf32> to vector<8x32xf32>
    %31 = vector.extract_strided_slice %27 {offsets = [0, 32], sizes = [8, 32], strides = [1, 1]} : vector<8x96xf32> to vector<8x32xf32>
    %32 = vector.extract_strided_slice %27 {offsets = [0, 64], sizes = [8, 32], strides = [1, 1]} : vector<8x96xf32> to vector<8x32xf32>
    %33 = arith.mulf %31, %16 : vector<8x32xf32>
    %34 = arith.mulf %30, %29 : vector<8x32xf32>
    %35 = arith.addf %33, %34 : vector<8x32xf32>
    %36 = math.tanh %35 : vector<8x32xf32>
    %37 = arith.mulf %32, %36 : vector<8x32xf32>
    %cst_25 = arith.constant dense<0.000000e+00> : vector<8x128xf32>
    %38 = tpu.matmul %37, %11, %cst_25 {dimension_numbers = #tpu.dot_dimension_numbers<[1], [0], [0], [1], [0, 0, 1, 1], [], []>} : vector<8x32xf32>, vector<32x128xf32>, vector<8x128xf32> -> vector<8x128xf32>
    %39 = arith.addf %38, %17 : vector<8x128xf32>
    %40 = arith.addf %39, %15 : vector<8x128xf32>
    %41 = vector.extract_strided_slice %40 {offsets = [0, 0], sizes = [8, 96], strides = [1, 1]} : vector<8x128xf32> to vector<8x96xf32>
    %42 = arith.negf %41 : vector<8x96xf32>
    %43 = math.exp %42 : vector<8x96xf32>
    %cst_26 = arith.constant 1.000000e+00 : f32
    %44 = vector.broadcast %cst_26 : f32 to vector<8x96xf32>
    %45 = arith.addf %44, %43 : vector<8x96xf32>
    %46 = arith.divf %44, %45 : vector<8x96xf32>
    %47 = vector.extract_strided_slice %40 {offsets = [0, 96], sizes = [8, 32], strides = [1, 1]} : vector<8x128xf32> to vector<8x32xf32>
    %48 = math.tanh %47 : vector<8x32xf32>
    %49 = vector.extract_strided_slice %46 {offsets = [0, 0], sizes = [8, 32], strides = [1, 1]} : vector<8x96xf32> to vector<8x32xf32>
    %50 = vector.extract_strided_slice %46 {offsets = [0, 32], sizes = [8, 32], strides = [1, 1]} : vector<8x96xf32> to vector<8x32xf32>
    %51 = vector.extract_strided_slice %46 {offsets = [0, 64], sizes = [8, 32], strides = [1, 1]} : vector<8x96xf32> to vector<8x32xf32>
    %52 = arith.mulf %50, %16 : vector<8x32xf32>
    %53 = arith.mulf %49, %48 : vector<8x32xf32>
    %54 = arith.addf %52, %53 : vector<8x32xf32>
    %55 = math.tanh %54 : vector<8x32xf32>
    %56 = arith.mulf %51, %55 : vector<8x32xf32>
    %cst_27 = arith.constant dense<0.000000e+00> : vector<8x128xf32>
    %57 = tpu.matmul %56, %12, %cst_27 {dimension_numbers = #tpu.dot_dimension_numbers<[1], [0], [0], [1], [0, 0, 1, 1], [], []>} : vector<8x32xf32>, vector<32x128xf32>, vector<8x128xf32> -> vector<8x128xf32>
    %c1 = arith.constant 1 : index
    %c0_28 = arith.constant 0 : index
    %c0_29 = arith.constant 0 : index
    %58 = vector.load %arg11[%c1, %c0_28, %c0_29] : memref<8x8x128xf32, #tpu.memory_space<vmem>>, vector<1x8x128xf32>
    %59 = vector.shape_cast %58 : vector<1x8x128xf32> to vector<8x128xf32>
    %cst_30 = arith.constant dense<0.000000e+00> : vector<8x128xf32>
    %60 = tpu.matmul %37, %10, %cst_30 {dimension_numbers = #tpu.dot_dimension_numbers<[1], [0], [0], [1], [0, 0, 1, 1], [], []>} : vector<8x32xf32>, vector<32x128xf32>, vector<8x128xf32> -> vector<8x128xf32>
    %61 = arith.addf %59, %60 : vector<8x128xf32>
    %62 = vector.extract_strided_slice %61 {offsets = [0, 0], sizes = [8, 96], strides = [1, 1]} : vector<8x128xf32> to vector<8x96xf32>
    %63 = arith.negf %62 : vector<8x96xf32>
    %64 = math.exp %63 : vector<8x96xf32>
    %cst_31 = arith.constant 1.000000e+00 : f32
    %65 = vector.broadcast %cst_31 : f32 to vector<8x96xf32>
    %66 = arith.addf %65, %64 : vector<8x96xf32>
    %67 = arith.divf %65, %66 : vector<8x96xf32>
    %68 = vector.extract_strided_slice %61 {offsets = [0, 96], sizes = [8, 32], strides = [1, 1]} : vector<8x128xf32> to vector<8x32xf32>
    %69 = math.tanh %68 : vector<8x32xf32>
    %70 = vector.extract_strided_slice %67 {offsets = [0, 0], sizes = [8, 32], strides = [1, 1]} : vector<8x96xf32> to vector<8x32xf32>
    %71 = vector.extract_strided_slice %67 {offsets = [0, 32], sizes = [8, 32], strides = [1, 1]} : vector<8x96xf32> to vector<8x32xf32>
    %72 = vector.extract_strided_slice %67 {offsets = [0, 64], sizes = [8, 32], strides = [1, 1]} : vector<8x96xf32> to vector<8x32xf32>
    %73 = arith.mulf %71, %35 : vector<8x32xf32>
    %74 = arith.mulf %70, %69 : vector<8x32xf32>
    %75 = arith.addf %73, %74 : vector<8x32xf32>
    %76 = math.tanh %75 : vector<8x32xf32>
    %77 = arith.mulf %72, %76 : vector<8x32xf32>
    %cst_32 = arith.constant dense<0.000000e+00> : vector<8x128xf32>
    %78 = tpu.matmul %77, %11, %cst_32 {dimension_numbers = #tpu.dot_dimension_numbers<[1], [0], [0], [1], [0, 0, 1, 1], [], []>} : vector<8x32xf32>, vector<32x128xf32>, vector<8x128xf32> -> vector<8x128xf32>
    %79 = arith.addf %78, %57 : vector<8x128xf32>
    %80 = arith.addf %79, %15 : vector<8x128xf32>
    %81 = vector.extract_strided_slice %80 {offsets = [0, 0], sizes = [8, 96], strides = [1, 1]} : vector<8x128xf32> to vector<8x96xf32>
    %82 = arith.negf %81 : vector<8x96xf32>
    %83 = math.exp %82 : vector<8x96xf32>
    %cst_33 = arith.constant 1.000000e+00 : f32
    %84 = vector.broadcast %cst_33 : f32 to vector<8x96xf32>
    %85 = arith.addf %84, %83 : vector<8x96xf32>
    %86 = arith.divf %84, %85 : vector<8x96xf32>
    %87 = vector.extract_strided_slice %80 {offsets = [0, 96], sizes = [8, 32], strides = [1, 1]} : vector<8x128xf32> to vector<8x32xf32>
    %88 = math.tanh %87 : vector<8x32xf32>
    %89 = vector.extract_strided_slice %86 {offsets = [0, 0], sizes = [8, 32], strides = [1, 1]} : vector<8x96xf32> to vector<8x32xf32>
    %90 = vector.extract_strided_slice %86 {offsets = [0, 32], sizes = [8, 32], strides = [1, 1]} : vector<8x96xf32> to vector<8x32xf32>
    %91 = vector.extract_strided_slice %86 {offsets = [0, 64], sizes = [8, 32], strides = [1, 1]} : vector<8x96xf32> to vector<8x32xf32>
    %92 = arith.mulf %90, %54 : vector<8x32xf32>
    %93 = arith.mulf %89, %88 : vector<8x32xf32>
    %94 = arith.addf %92, %93 : vector<8x32xf32>
    %95 = math.tanh %94 : vector<8x32xf32>
    %96 = arith.mulf %91, %95 : vector<8x32xf32>
    %cst_34 = arith.constant dense<0.000000e+00> : vector<8x128xf32>
    %97 = tpu.matmul %96, %12, %cst_34 {dimension_numbers = #tpu.dot_dimension_numbers<[1], [0], [0], [1], [0, 0, 1, 1], [], []>} : vector<8x32xf32>, vector<32x128xf32>, vector<8x128xf32> -> vector<8x128xf32>
    %c2 = arith.constant 2 : index
    %c0_35 = arith.constant 0 : index
    %c0_36 = arith.constant 0 : index
    %98 = vector.load %arg11[%c2, %c0_35, %c0_36] : memref<8x8x128xf32, #tpu.memory_space<vmem>>, vector<1x8x128xf32>
    %99 = vector.shape_cast %98 : vector<1x8x128xf32> to vector<8x128xf32>
    %cst_37 = arith.constant dense<0.000000e+00> : vector<8x128xf32>
    %100 = tpu.matmul %77, %10, %cst_37 {dimension_numbers = #tpu.dot_dimension_numbers<[1], [0], [0], [1], [0, 0, 1, 1], [], []>} : vector<8x32xf32>, vector<32x128xf32>, vector<8x128xf32> -> vector<8x128xf32>
    %101 = arith.addf %99, %100 : vector<8x128xf32>
    %102 = vector.extract_strided_slice %101 {offsets = [0, 0], sizes = [8, 96], strides = [1, 1]} : vector<8x128xf32> to vector<8x96xf32>
    %103 = arith.negf %102 : vector<8x96xf32>
    %104 = math.exp %103 : vector<8x96xf32>
    %cst_38 = arith.constant 1.000000e+00 : f32
    %105 = vector.broadcast %cst_38 : f32 to vector<8x96xf32>
    %106 = arith.addf %105, %104 : vector<8x96xf32>
    %107 = arith.divf %105, %106 : vector<8x96xf32>
    %108 = vector.extract_strided_slice %101 {offsets = [0, 96], sizes = [8, 32], strides = [1, 1]} : vector<8x128xf32> to vector<8x32xf32>
    %109 = math.tanh %108 : vector<8x32xf32>
    %110 = vector.extract_strided_slice %107 {offsets = [0, 0], sizes = [8, 32], strides = [1, 1]} : vector<8x96xf32> to vector<8x32xf32>
    %111 = vector.extract_strided_slice %107 {offsets = [0, 32], sizes = [8, 32], strides = [1, 1]} : vector<8x96xf32> to vector<8x32xf32>
    %112 = vector.extract_strided_slice %107 {offsets = [0, 64], sizes = [8, 32], strides = [1, 1]} : vector<8x96xf32> to vector<8x32xf32>
    %113 = arith.mulf %111, %75 : vector<8x32xf32>
    %114 = arith.mulf %110, %109 : vector<8x32xf32>
    %115 = arith.addf %113, %114 : vector<8x32xf32>
    %116 = math.tanh %115 : vector<8x32xf32>
    %117 = arith.mulf %112, %116 : vector<8x32xf32>
    %cst_39 = arith.constant dense<0.000000e+00> : vector<8x128xf32>
    %118 = tpu.matmul %117, %11, %cst_39 {dimension_numbers = #tpu.dot_dimension_numbers<[1], [0], [0], [1], [0, 0, 1, 1], [], []>} : vector<8x32xf32>, vector<32x128xf32>, vector<8x128xf32> -> vector<8x128xf32>
    %119 = arith.addf %118, %97 : vector<8x128xf32>
    %120 = arith.addf %119, %15 : vector<8x128xf32>
    %121 = vector.extract_strided_slice %120 {offsets = [0, 0], sizes = [8, 96], strides = [1, 1]} : vector<8x128xf32> to vector<8x96xf32>
    %122 = arith.negf %121 : vector<8x96xf32>
    %123 = math.exp %122 : vector<8x96xf32>
    %cst_40 = arith.constant 1.000000e+00 : f32
    %124 = vector.broadcast %cst_40 : f32 to vector<8x96xf32>
    %125 = arith.addf %124, %123 : vector<8x96xf32>
    %126 = arith.divf %124, %125 : vector<8x96xf32>
    %127 = vector.extract_strided_slice %120 {offsets = [0, 96], sizes = [8, 32], strides = [1, 1]} : vector<8x128xf32> to vector<8x32xf32>
    %128 = math.tanh %127 : vector<8x32xf32>
    %129 = vector.extract_strided_slice %126 {offsets = [0, 0], sizes = [8, 32], strides = [1, 1]} : vector<8x96xf32> to vector<8x32xf32>
    %130 = vector.extract_strided_slice %126 {offsets = [0, 32], sizes = [8, 32], strides = [1, 1]} : vector<8x96xf32> to vector<8x32xf32>
    %131 = vector.extract_strided_slice %126 {offsets = [0, 64], sizes = [8, 32], strides = [1, 1]} : vector<8x96xf32> to vector<8x32xf32>
    %132 = arith.mulf %130, %94 : vector<8x32xf32>
    %133 = arith.mulf %129, %128 : vector<8x32xf32>
    %134 = arith.addf %132, %133 : vector<8x32xf32>
    %135 = math.tanh %134 : vector<8x32xf32>
    %136 = arith.mulf %131, %135 : vector<8x32xf32>
    %cst_41 = arith.constant dense<0.000000e+00> : vector<8x128xf32>
    %137 = tpu.matmul %136, %12, %cst_41 {dimension_numbers = #tpu.dot_dimension_numbers<[1], [0], [0], [1], [0, 0, 1, 1], [], []>} : vector<8x32xf32>, vector<32x128xf32>, vector<8x128xf32> -> vector<8x128xf32>
    %c3 = arith.constant 3 : index
    %c0_42 = arith.constant 0 : index
    %c0_43 = arith.constant 0 : index
    %138 = vector.load %arg11[%c3, %c0_42, %c0_43] : memref<8x8x128xf32, #tpu.memory_space<vmem>>, vector<1x8x128xf32>
    %139 = vector.shape_cast %138 : vector<1x8x128xf32> to vector<8x128xf32>
    %cst_44 = arith.constant dense<0.000000e+00> : vector<8x128xf32>
    %140 = tpu.matmul %117, %10, %cst_44 {dimension_numbers = #tpu.dot_dimension_numbers<[1], [0], [0], [1], [0, 0, 1, 1], [], []>} : vector<8x32xf32>, vector<32x128xf32>, vector<8x128xf32> -> vector<8x128xf32>
    %141 = arith.addf %139, %140 : vector<8x128xf32>
    %142 = vector.extract_strided_slice %141 {offsets = [0, 0], sizes = [8, 96], strides = [1, 1]} : vector<8x128xf32> to vector<8x96xf32>
    %143 = arith.negf %142 : vector<8x96xf32>
    %144 = math.exp %143 : vector<8x96xf32>
    %cst_45 = arith.constant 1.000000e+00 : f32
    %145 = vector.broadcast %cst_45 : f32 to vector<8x96xf32>
    %146 = arith.addf %145, %144 : vector<8x96xf32>
    %147 = arith.divf %145, %146 : vector<8x96xf32>
    %148 = vector.extract_strided_slice %141 {offsets = [0, 96], sizes = [8, 32], strides = [1, 1]} : vector<8x128xf32> to vector<8x32xf32>
    %149 = math.tanh %148 : vector<8x32xf32>
    %150 = vector.extract_strided_slice %147 {offsets = [0, 0], sizes = [8, 32], strides = [1, 1]} : vector<8x96xf32> to vector<8x32xf32>
    %151 = vector.extract_strided_slice %147 {offsets = [0, 32], sizes = [8, 32], strides = [1, 1]} : vector<8x96xf32> to vector<8x32xf32>
    %152 = vector.extract_strided_slice %147 {offsets = [0, 64], sizes = [8, 32], strides = [1, 1]} : vector<8x96xf32> to vector<8x32xf32>
    %153 = arith.mulf %151, %115 : vector<8x32xf32>
    %154 = arith.mulf %150, %149 : vector<8x32xf32>
    %155 = arith.addf %153, %154 : vector<8x32xf32>
    %156 = math.tanh %155 : vector<8x32xf32>
    %157 = arith.mulf %152, %156 : vector<8x32xf32>
    %cst_46 = arith.constant dense<0.000000e+00> : vector<8x128xf32>
    %158 = tpu.matmul %157, %11, %cst_46 {dimension_numbers = #tpu.dot_dimension_numbers<[1], [0], [0], [1], [0, 0, 1, 1], [], []>} : vector<8x32xf32>, vector<32x128xf32>, vector<8x128xf32> -> vector<8x128xf32>
    %159 = arith.addf %158, %137 : vector<8x128xf32>
    %160 = arith.addf %159, %15 : vector<8x128xf32>
    %161 = vector.extract_strided_slice %160 {offsets = [0, 0], sizes = [8, 96], strides = [1, 1]} : vector<8x128xf32> to vector<8x96xf32>
    %162 = arith.negf %161 : vector<8x96xf32>
    %163 = math.exp %162 : vector<8x96xf32>
    %cst_47 = arith.constant 1.000000e+00 : f32
    %164 = vector.broadcast %cst_47 : f32 to vector<8x96xf32>
    %165 = arith.addf %164, %163 : vector<8x96xf32>
    %166 = arith.divf %164, %165 : vector<8x96xf32>
    %167 = vector.extract_strided_slice %160 {offsets = [0, 96], sizes = [8, 32], strides = [1, 1]} : vector<8x128xf32> to vector<8x32xf32>
    %168 = math.tanh %167 : vector<8x32xf32>
    %169 = vector.extract_strided_slice %166 {offsets = [0, 0], sizes = [8, 32], strides = [1, 1]} : vector<8x96xf32> to vector<8x32xf32>
    %170 = vector.extract_strided_slice %166 {offsets = [0, 32], sizes = [8, 32], strides = [1, 1]} : vector<8x96xf32> to vector<8x32xf32>
    %171 = vector.extract_strided_slice %166 {offsets = [0, 64], sizes = [8, 32], strides = [1, 1]} : vector<8x96xf32> to vector<8x32xf32>
    %172 = arith.mulf %170, %134 : vector<8x32xf32>
    %173 = arith.mulf %169, %168 : vector<8x32xf32>
    %174 = arith.addf %172, %173 : vector<8x32xf32>
    %175 = math.tanh %174 : vector<8x32xf32>
    %176 = arith.mulf %171, %175 : vector<8x32xf32>
    %cst_48 = arith.constant dense<0.000000e+00> : vector<8x128xf32>
    %177 = tpu.matmul %176, %12, %cst_48 {dimension_numbers = #tpu.dot_dimension_numbers<[1], [0], [0], [1], [0, 0, 1, 1], [], []>} : vector<8x32xf32>, vector<32x128xf32>, vector<8x128xf32> -> vector<8x128xf32>
    %c4 = arith.constant 4 : index
    %c0_49 = arith.constant 0 : index
    %c0_50 = arith.constant 0 : index
    %178 = vector.load %arg11[%c4, %c0_49, %c0_50] : memref<8x8x128xf32, #tpu.memory_space<vmem>>, vector<1x8x128xf32>
    %179 = vector.shape_cast %178 : vector<1x8x128xf32> to vector<8x128xf32>
    %cst_51 = arith.constant dense<0.000000e+00> : vector<8x128xf32>
    %180 = tpu.matmul %157, %10, %cst_51 {dimension_numbers = #tpu.dot_dimension_numbers<[1], [0], [0], [1], [0, 0, 1, 1], [], []>} : vector<8x32xf32>, vector<32x128xf32>, vector<8x128xf32> -> vector<8x128xf32>
    %181 = arith.addf %179, %180 : vector<8x128xf32>
    %182 = vector.extract_strided_slice %181 {offsets = [0, 0], sizes = [8, 96], strides = [1, 1]} : vector<8x128xf32> to vector<8x96xf32>
    %183 = arith.negf %182 : vector<8x96xf32>
    %184 = math.exp %183 : vector<8x96xf32>
    %cst_52 = arith.constant 1.000000e+00 : f32
    %185 = vector.broadcast %cst_52 : f32 to vector<8x96xf32>
    %186 = arith.addf %185, %184 : vector<8x96xf32>
    %187 = arith.divf %185, %186 : vector<8x96xf32>
    %188 = vector.extract_strided_slice %181 {offsets = [0, 96], sizes = [8, 32], strides = [1, 1]} : vector<8x128xf32> to vector<8x32xf32>
    %189 = math.tanh %188 : vector<8x32xf32>
    %190 = vector.extract_strided_slice %187 {offsets = [0, 0], sizes = [8, 32], strides = [1, 1]} : vector<8x96xf32> to vector<8x32xf32>
    %191 = vector.extract_strided_slice %187 {offsets = [0, 32], sizes = [8, 32], strides = [1, 1]} : vector<8x96xf32> to vector<8x32xf32>
    %192 = vector.extract_strided_slice %187 {offsets = [0, 64], sizes = [8, 32], strides = [1, 1]} : vector<8x96xf32> to vector<8x32xf32>
    %193 = arith.mulf %191, %155 : vector<8x32xf32>
    %194 = arith.mulf %190, %189 : vector<8x32xf32>
    %195 = arith.addf %193, %194 : vector<8x32xf32>
    %196 = math.tanh %195 : vector<8x32xf32>
    %197 = arith.mulf %192, %196 : vector<8x32xf32>
    %cst_53 = arith.constant dense<0.000000e+00> : vector<8x128xf32>
    %198 = tpu.matmul %197, %11, %cst_53 {dimension_numbers = #tpu.dot_dimension_numbers<[1], [0], [0], [1], [0, 0, 1, 1], [], []>} : vector<8x32xf32>, vector<32x128xf32>, vector<8x128xf32> -> vector<8x128xf32>
    %199 = arith.addf %198, %177 : vector<8x128xf32>
    %200 = arith.addf %199, %15 : vector<8x128xf32>
    %201 = vector.extract_strided_slice %200 {offsets = [0, 0], sizes = [8, 96], strides = [1, 1]} : vector<8x128xf32> to vector<8x96xf32>
    %202 = arith.negf %201 : vector<8x96xf32>
    %203 = math.exp %202 : vector<8x96xf32>
    %cst_54 = arith.constant 1.000000e+00 : f32
    %204 = vector.broadcast %cst_54 : f32 to vector<8x96xf32>
    %205 = arith.addf %204, %203 : vector<8x96xf32>
    %206 = arith.divf %204, %205 : vector<8x96xf32>
    %207 = vector.extract_strided_slice %200 {offsets = [0, 96], sizes = [8, 32], strides = [1, 1]} : vector<8x128xf32> to vector<8x32xf32>
    %208 = math.tanh %207 : vector<8x32xf32>
    %209 = vector.extract_strided_slice %206 {offsets = [0, 0], sizes = [8, 32], strides = [1, 1]} : vector<8x96xf32> to vector<8x32xf32>
    %210 = vector.extract_strided_slice %206 {offsets = [0, 32], sizes = [8, 32], strides = [1, 1]} : vector<8x96xf32> to vector<8x32xf32>
    %211 = vector.extract_strided_slice %206 {offsets = [0, 64], sizes = [8, 32], strides = [1, 1]} : vector<8x96xf32> to vector<8x32xf32>
    %212 = arith.mulf %210, %174 : vector<8x32xf32>
    %213 = arith.mulf %209, %208 : vector<8x32xf32>
    %214 = arith.addf %212, %213 : vector<8x32xf32>
    %215 = math.tanh %214 : vector<8x32xf32>
    %216 = arith.mulf %211, %215 : vector<8x32xf32>
    %cst_55 = arith.constant dense<0.000000e+00> : vector<8x128xf32>
    %217 = tpu.matmul %216, %12, %cst_55 {dimension_numbers = #tpu.dot_dimension_numbers<[1], [0], [0], [1], [0, 0, 1, 1], [], []>} : vector<8x32xf32>, vector<32x128xf32>, vector<8x128xf32> -> vector<8x128xf32>
    %c5 = arith.constant 5 : index
    %c0_56 = arith.constant 0 : index
    %c0_57 = arith.constant 0 : index
    %218 = vector.load %arg11[%c5, %c0_56, %c0_57] : memref<8x8x128xf32, #tpu.memory_space<vmem>>, vector<1x8x128xf32>
    %219 = vector.shape_cast %218 : vector<1x8x128xf32> to vector<8x128xf32>
    %cst_58 = arith.constant dense<0.000000e+00> : vector<8x128xf32>
    %220 = tpu.matmul %197, %10, %cst_58 {dimension_numbers = #tpu.dot_dimension_numbers<[1], [0], [0], [1], [0, 0, 1, 1], [], []>} : vector<8x32xf32>, vector<32x128xf32>, vector<8x128xf32> -> vector<8x128xf32>
    %221 = arith.addf %219, %220 : vector<8x128xf32>
    %222 = vector.extract_strided_slice %221 {offsets = [0, 0], sizes = [8, 96], strides = [1, 1]} : vector<8x128xf32> to vector<8x96xf32>
    %223 = arith.negf %222 : vector<8x96xf32>
    %224 = math.exp %223 : vector<8x96xf32>
    %cst_59 = arith.constant 1.000000e+00 : f32
    %225 = vector.broadcast %cst_59 : f32 to vector<8x96xf32>
    %226 = arith.addf %225, %224 : vector<8x96xf32>
    %227 = arith.divf %225, %226 : vector<8x96xf32>
    %228 = vector.extract_strided_slice %221 {offsets = [0, 96], sizes = [8, 32], strides = [1, 1]} : vector<8x128xf32> to vector<8x32xf32>
    %229 = math.tanh %228 : vector<8x32xf32>
    %230 = vector.extract_strided_slice %227 {offsets = [0, 0], sizes = [8, 32], strides = [1, 1]} : vector<8x96xf32> to vector<8x32xf32>
    %231 = vector.extract_strided_slice %227 {offsets = [0, 32], sizes = [8, 32], strides = [1, 1]} : vector<8x96xf32> to vector<8x32xf32>
    %232 = vector.extract_strided_slice %227 {offsets = [0, 64], sizes = [8, 32], strides = [1, 1]} : vector<8x96xf32> to vector<8x32xf32>
    %233 = arith.mulf %231, %195 : vector<8x32xf32>
    %234 = arith.mulf %230, %229 : vector<8x32xf32>
    %235 = arith.addf %233, %234 : vector<8x32xf32>
    %236 = math.tanh %235 : vector<8x32xf32>
    %237 = arith.mulf %232, %236 : vector<8x32xf32>
    %cst_60 = arith.constant dense<0.000000e+00> : vector<8x128xf32>
    %238 = tpu.matmul %237, %11, %cst_60 {dimension_numbers = #tpu.dot_dimension_numbers<[1], [0], [0], [1], [0, 0, 1, 1], [], []>} : vector<8x32xf32>, vector<32x128xf32>, vector<8x128xf32> -> vector<8x128xf32>
    %239 = arith.addf %238, %217 : vector<8x128xf32>
    %240 = arith.addf %239, %15 : vector<8x128xf32>
    %241 = vector.extract_strided_slice %240 {offsets = [0, 0], sizes = [8, 96], strides = [1, 1]} : vector<8x128xf32> to vector<8x96xf32>
    %242 = arith.negf %241 : vector<8x96xf32>
    %243 = math.exp %242 : vector<8x96xf32>
    %cst_61 = arith.constant 1.000000e+00 : f32
    %244 = vector.broadcast %cst_61 : f32 to vector<8x96xf32>
    %245 = arith.addf %244, %243 : vector<8x96xf32>
    %246 = arith.divf %244, %245 : vector<8x96xf32>
    %247 = vector.extract_strided_slice %240 {offsets = [0, 96], sizes = [8, 32], strides = [1, 1]} : vector<8x128xf32> to vector<8x32xf32>
    %248 = math.tanh %247 : vector<8x32xf32>
    %249 = vector.extract_strided_slice %246 {offsets = [0, 0], sizes = [8, 32], strides = [1, 1]} : vector<8x96xf32> to vector<8x32xf32>
    %250 = vector.extract_strided_slice %246 {offsets = [0, 32], sizes = [8, 32], strides = [1, 1]} : vector<8x96xf32> to vector<8x32xf32>
    %251 = vector.extract_strided_slice %246 {offsets = [0, 64], sizes = [8, 32], strides = [1, 1]} : vector<8x96xf32> to vector<8x32xf32>
    %252 = arith.mulf %250, %214 : vector<8x32xf32>
    %253 = arith.mulf %249, %248 : vector<8x32xf32>
    %254 = arith.addf %252, %253 : vector<8x32xf32>
    %255 = math.tanh %254 : vector<8x32xf32>
    %256 = arith.mulf %251, %255 : vector<8x32xf32>
    %cst_62 = arith.constant dense<0.000000e+00> : vector<8x128xf32>
    %257 = tpu.matmul %256, %12, %cst_62 {dimension_numbers = #tpu.dot_dimension_numbers<[1], [0], [0], [1], [0, 0, 1, 1], [], []>} : vector<8x32xf32>, vector<32x128xf32>, vector<8x128xf32> -> vector<8x128xf32>
    %c6 = arith.constant 6 : index
    %c0_63 = arith.constant 0 : index
    %c0_64 = arith.constant 0 : index
    %258 = vector.load %arg11[%c6, %c0_63, %c0_64] : memref<8x8x128xf32, #tpu.memory_space<vmem>>, vector<1x8x128xf32>
    %259 = vector.shape_cast %258 : vector<1x8x128xf32> to vector<8x128xf32>
    %cst_65 = arith.constant dense<0.000000e+00> : vector<8x128xf32>
    %260 = tpu.matmul %237, %10, %cst_65 {dimension_numbers = #tpu.dot_dimension_numbers<[1], [0], [0], [1], [0, 0, 1, 1], [], []>} : vector<8x32xf32>, vector<32x128xf32>, vector<8x128xf32> -> vector<8x128xf32>
    %261 = arith.addf %259, %260 : vector<8x128xf32>
    %262 = vector.extract_strided_slice %261 {offsets = [0, 0], sizes = [8, 96], strides = [1, 1]} : vector<8x128xf32> to vector<8x96xf32>
    %263 = arith.negf %262 : vector<8x96xf32>
    %264 = math.exp %263 : vector<8x96xf32>
    %cst_66 = arith.constant 1.000000e+00 : f32
    %265 = vector.broadcast %cst_66 : f32 to vector<8x96xf32>
    %266 = arith.addf %265, %264 : vector<8x96xf32>
    %267 = arith.divf %265, %266 : vector<8x96xf32>
    %268 = vector.extract_strided_slice %261 {offsets = [0, 96], sizes = [8, 32], strides = [1, 1]} : vector<8x128xf32> to vector<8x32xf32>
    %269 = math.tanh %268 : vector<8x32xf32>
    %270 = vector.extract_strided_slice %267 {offsets = [0, 0], sizes = [8, 32], strides = [1, 1]} : vector<8x96xf32> to vector<8x32xf32>
    %271 = vector.extract_strided_slice %267 {offsets = [0, 32], sizes = [8, 32], strides = [1, 1]} : vector<8x96xf32> to vector<8x32xf32>
    %272 = vector.extract_strided_slice %267 {offsets = [0, 64], sizes = [8, 32], strides = [1, 1]} : vector<8x96xf32> to vector<8x32xf32>
    %273 = arith.mulf %271, %235 : vector<8x32xf32>
    %274 = arith.mulf %270, %269 : vector<8x32xf32>
    %275 = arith.addf %273, %274 : vector<8x32xf32>
    %276 = math.tanh %275 : vector<8x32xf32>
    %277 = arith.mulf %272, %276 : vector<8x32xf32>
    %cst_67 = arith.constant dense<0.000000e+00> : vector<8x128xf32>
    %278 = tpu.matmul %277, %11, %cst_67 {dimension_numbers = #tpu.dot_dimension_numbers<[1], [0], [0], [1], [0, 0, 1, 1], [], []>} : vector<8x32xf32>, vector<32x128xf32>, vector<8x128xf32> -> vector<8x128xf32>
    %279 = arith.addf %278, %257 : vector<8x128xf32>
    %280 = arith.addf %279, %15 : vector<8x128xf32>
    %281 = vector.extract_strided_slice %280 {offsets = [0, 0], sizes = [8, 96], strides = [1, 1]} : vector<8x128xf32> to vector<8x96xf32>
    %282 = arith.negf %281 : vector<8x96xf32>
    %283 = math.exp %282 : vector<8x96xf32>
    %cst_68 = arith.constant 1.000000e+00 : f32
    %284 = vector.broadcast %cst_68 : f32 to vector<8x96xf32>
    %285 = arith.addf %284, %283 : vector<8x96xf32>
    %286 = arith.divf %284, %285 : vector<8x96xf32>
    %287 = vector.extract_strided_slice %280 {offsets = [0, 96], sizes = [8, 32], strides = [1, 1]} : vector<8x128xf32> to vector<8x32xf32>
    %288 = math.tanh %287 : vector<8x32xf32>
    %289 = vector.extract_strided_slice %286 {offsets = [0, 0], sizes = [8, 32], strides = [1, 1]} : vector<8x96xf32> to vector<8x32xf32>
    %290 = vector.extract_strided_slice %286 {offsets = [0, 32], sizes = [8, 32], strides = [1, 1]} : vector<8x96xf32> to vector<8x32xf32>
    %291 = vector.extract_strided_slice %286 {offsets = [0, 64], sizes = [8, 32], strides = [1, 1]} : vector<8x96xf32> to vector<8x32xf32>
    %292 = arith.mulf %290, %254 : vector<8x32xf32>
    %293 = arith.mulf %289, %288 : vector<8x32xf32>
    %294 = arith.addf %292, %293 : vector<8x32xf32>
    %295 = math.tanh %294 : vector<8x32xf32>
    %296 = arith.mulf %291, %295 : vector<8x32xf32>
    %cst_69 = arith.constant dense<0.000000e+00> : vector<8x128xf32>
    %297 = tpu.matmul %296, %12, %cst_69 {dimension_numbers = #tpu.dot_dimension_numbers<[1], [0], [0], [1], [0, 0, 1, 1], [], []>} : vector<8x32xf32>, vector<32x128xf32>, vector<8x128xf32> -> vector<8x128xf32>
    %c7 = arith.constant 7 : index
    %c0_70 = arith.constant 0 : index
    %c0_71 = arith.constant 0 : index
    %298 = vector.load %arg11[%c7, %c0_70, %c0_71] : memref<8x8x128xf32, #tpu.memory_space<vmem>>, vector<1x8x128xf32>
    %299 = vector.shape_cast %298 : vector<1x8x128xf32> to vector<8x128xf32>
    %cst_72 = arith.constant dense<0.000000e+00> : vector<8x128xf32>
    %300 = tpu.matmul %277, %10, %cst_72 {dimension_numbers = #tpu.dot_dimension_numbers<[1], [0], [0], [1], [0, 0, 1, 1], [], []>} : vector<8x32xf32>, vector<32x128xf32>, vector<8x128xf32> -> vector<8x128xf32>
    %301 = arith.addf %299, %300 : vector<8x128xf32>
    %302 = vector.extract_strided_slice %301 {offsets = [0, 0], sizes = [8, 96], strides = [1, 1]} : vector<8x128xf32> to vector<8x96xf32>
    %303 = arith.negf %302 : vector<8x96xf32>
    %304 = math.exp %303 : vector<8x96xf32>
    %cst_73 = arith.constant 1.000000e+00 : f32
    %305 = vector.broadcast %cst_73 : f32 to vector<8x96xf32>
    %306 = arith.addf %305, %304 : vector<8x96xf32>
    %307 = arith.divf %305, %306 : vector<8x96xf32>
    %308 = vector.extract_strided_slice %301 {offsets = [0, 96], sizes = [8, 32], strides = [1, 1]} : vector<8x128xf32> to vector<8x32xf32>
    %309 = math.tanh %308 : vector<8x32xf32>
    %310 = vector.extract_strided_slice %307 {offsets = [0, 0], sizes = [8, 32], strides = [1, 1]} : vector<8x96xf32> to vector<8x32xf32>
    %311 = vector.extract_strided_slice %307 {offsets = [0, 32], sizes = [8, 32], strides = [1, 1]} : vector<8x96xf32> to vector<8x32xf32>
    %312 = vector.extract_strided_slice %307 {offsets = [0, 64], sizes = [8, 32], strides = [1, 1]} : vector<8x96xf32> to vector<8x32xf32>
    %313 = arith.mulf %311, %275 : vector<8x32xf32>
    %314 = arith.mulf %310, %309 : vector<8x32xf32>
    %315 = arith.addf %313, %314 : vector<8x32xf32>
    %316 = math.tanh %315 : vector<8x32xf32>
    %317 = arith.mulf %312, %316 : vector<8x32xf32>
    %cst_74 = arith.constant dense<0.000000e+00> : vector<8x128xf32>
    %318 = tpu.matmul %317, %11, %cst_74 {dimension_numbers = #tpu.dot_dimension_numbers<[1], [0], [0], [1], [0, 0, 1, 1], [], []>} : vector<8x32xf32>, vector<32x128xf32>, vector<8x128xf32> -> vector<8x128xf32>
    %319 = arith.addf %318, %297 : vector<8x128xf32>
    %320 = arith.addf %319, %15 : vector<8x128xf32>
    %321 = vector.extract_strided_slice %320 {offsets = [0, 0], sizes = [8, 96], strides = [1, 1]} : vector<8x128xf32> to vector<8x96xf32>
    %322 = arith.negf %321 : vector<8x96xf32>
    %323 = math.exp %322 : vector<8x96xf32>
    %cst_75 = arith.constant 1.000000e+00 : f32
    %324 = vector.broadcast %cst_75 : f32 to vector<8x96xf32>
    %325 = arith.addf %324, %323 : vector<8x96xf32>
    %326 = arith.divf %324, %325 : vector<8x96xf32>
    %327 = vector.extract_strided_slice %320 {offsets = [0, 96], sizes = [8, 32], strides = [1, 1]} : vector<8x128xf32> to vector<8x32xf32>
    %328 = math.tanh %327 : vector<8x32xf32>
    %329 = vector.extract_strided_slice %326 {offsets = [0, 0], sizes = [8, 32], strides = [1, 1]} : vector<8x96xf32> to vector<8x32xf32>
    %330 = vector.extract_strided_slice %326 {offsets = [0, 32], sizes = [8, 32], strides = [1, 1]} : vector<8x96xf32> to vector<8x32xf32>
    %331 = vector.extract_strided_slice %326 {offsets = [0, 64], sizes = [8, 32], strides = [1, 1]} : vector<8x96xf32> to vector<8x32xf32>
    %332 = arith.mulf %330, %294 : vector<8x32xf32>
    %333 = arith.mulf %329, %328 : vector<8x32xf32>
    %334 = arith.addf %332, %333 : vector<8x32xf32>
    %335 = math.tanh %334 : vector<8x32xf32>
    %336 = arith.mulf %331, %335 : vector<8x32xf32>
    %c0_76 = arith.constant 0 : index
    %c0_77 = arith.constant 0 : index
    %337 = vector.load %arg8[%c0_76, %c0_77] : memref<32x1xf32, #tpu.memory_space<vmem>>, vector<32x1xf32>
    %cst_78 = arith.constant dense<0.000000e+00> : vector<8x1xf32>
    %338 = tpu.matmul %336, %337, %cst_78 {dimension_numbers = #tpu.dot_dimension_numbers<[1], [0], [0], [1], [0, 0, 1, 1], [], []>} : vector<8x32xf32>, vector<32x1xf32>, vector<8x1xf32> -> vector<8x1xf32>
    %c0_79 = arith.constant 0 : index
    %c0_80 = arith.constant 0 : index
    %339 = vector.load %arg9[%c0_79, %c0_80] : memref<1x1xf32, #tpu.memory_space<vmem>>, vector<1x1xf32>
    %340 = vector.broadcast %339 : vector<1x1xf32> to vector<8x1xf32>
    %341 = arith.addf %338, %340 : vector<8x1xf32>
    %c0_81 = arith.constant 0 : index
    %c0_82 = arith.constant 0 : index
    %342 = vector.load %arg10[%c0_81, %c0_82] : memref<8x1xf32, #tpu.memory_space<vmem>>, vector<8x1xf32>
    tpu.vector_store %arg10[%c0_81, %c0_82], %341 {strides = array<i32>} : memref<8x1xf32, #tpu.memory_space<vmem>>, vector<8x1xf32>,
    return
  }
  func.func @transform_0(%arg0: i32) -> (i32, i32, i32, i32) {
    %c0_i32 = arith.constant 0 : i32
    %c0_i32_0 = arith.constant 0 : i32
    %c0_i32_1 = arith.constant 0 : i32
    %c0_i32_2 = arith.constant 0 : i32
    return %arg0, %c0_i32, %c0_i32_0, %c0_i32_1 : i32, i32, i32, i32
  }
  func.func @transform_1(%arg0: i32) -> (i32, i32) {
    %c0_i32 = arith.constant 0 : i32
    %c0_i32_0 = arith.constant 0 : i32
    %c0_i32_1 = arith.constant 0 : i32
    return %c0_i32, %c0_i32_0 : i32, i32
  }
  func.func @transform_2(%arg0: i32) -> (i32, i32) {
    %c0_i32 = arith.constant 0 : i32
    %c0_i32_0 = arith.constant 0 : i32
    %c0_i32_1 = arith.constant 0 : i32
    return %c0_i32, %c0_i32_0 : i32, i32
  }
  func.func @transform_3(%arg0: i32) -> (i32, i32) {
    %c0_i32 = arith.constant 0 : i32
    %c0_i32_0 = arith.constant 0 : i32
    %c0_i32_1 = arith.constant 0 : i32
    return %c0_i32, %c0_i32_0 : i32, i32
  }
  func.func @transform_4(%arg0: i32) -> (i32, i32) {
    %c0_i32 = arith.constant 0 : i32
    %c0_i32_0 = arith.constant 0 : i32
    %c0_i32_1 = arith.constant 0 : i32
    return %c0_i32, %c0_i32_0 : i32, i32
  }
  func.func @transform_5(%arg0: i32) -> (i32, i32) {
    %c0_i32 = arith.constant 0 : i32
    %c0_i32_0 = arith.constant 0 : i32
    %c0_i32_1 = arith.constant 0 : i32
    return %c0_i32, %c0_i32_0 : i32, i32
  }
  func.func @transform_6(%arg0: i32) -> (i32, i32) {
    %c0_i32 = arith.constant 0 : i32
    %c0_i32_0 = arith.constant 0 : i32
    %c0_i32_1 = arith.constant 0 : i32
    return %c0_i32, %c0_i32_0 : i32, i32
  }
  func.func @transform_7(%arg0: i32) -> (i32, i32) {
    %c0_i32 = arith.constant 0 : i32
    %c0_i32_0 = arith.constant 0 : i32
    %c0_i32_1 = arith.constant 0 : i32
    return %c0_i32, %c0_i32_0 : i32, i32
  }
  func.func @transform_8(%arg0: i32) -> (i32, i32) {
    %c0_i32 = arith.constant 0 : i32
    %c0_i32_0 = arith.constant 0 : i32
    %c0_i32_1 = arith.constant 0 : i32
    return %c0_i32, %c0_i32_0 : i32, i32
  }
  func.func @transform_9(%arg0: i32) -> (i32, i32) {
    %c0_i32 = arith.constant 0 : i32
    %c0_i32_0 = arith.constant 0 : i32
    return %arg0, %c0_i32 : i32, i32
  }
}

</mosaic_0001>

<llo_original>
// kernel: tpu_custom_call.1
$region0: #{tpu_custom_call.1}
  #allocation0 [shape = 'u32[]', space=smem, size = 0x4, offset = 0x4, fixed_abs, tag = 'smem constant byte address 0x4 - core index']
  #allocation1 [shape = 'u32[144,128]{1,0:T(1,128)}', space=vmem, size = 0x12000, scoped, tag = 'internal scratch']
  #allocation2 [shape = 'f32[8,8,128]{2,1,0:T(8,128)}', space=vmem, size = 0x8000, scoped, tag = 'scratch operand']
  #allocation3 [shape = 'f32[1,1]{1,0:T(1,128)S(1)}', space=vmem, size = 0x200, scoped, tag = 'scoped memory for tpu_custom_call.1']
  %s0 = inlined_call_operand.vmem [shape: f32[1,8,8,4], index: 0, kind: input, shape index: {}]
  %s1 = inlined_call_operand.vmem [shape: f32[4,128], index: 1, kind: input, shape index: {}]
  %s2 = inlined_call_operand.vmem [shape: f32[1,128], index: 2, kind: input, shape index: {}]
  %s3 = inlined_call_operand.vmem [shape: f32[32,128], index: 3, kind: input, shape index: {}]
  %s4 = inlined_call_operand.vmem [shape: f32[32,128], index: 4, kind: input, shape index: {}]
  %s5 = inlined_call_operand.vmem [shape: f32[32,128], index: 5, kind: input, shape index: {}]
  %s6 = inlined_call_operand.vmem [shape: f32[1,128], index: 6, kind: input, shape index: {}]
  %s7 = inlined_call_operand.vmem [shape: f32[32,1], index: 7, kind: input, shape index: {}]
  %s8 = inlined_call_operand.<no memory space> [shape: f32[1,1], index: 8, kind: input, shape index: {}]
  %s9 = inlined_call_operand.vmem [shape: f32[8,1], index: 9, kind: output, shape index: {}]
  %s10 = sld [smem:[#allocation0]]
  $region46: #{tpu_custom_call.1} parent=0
    _
  %s12 = ssub.s32 1, %s10
  %s13 = scalar_select 0, %s12, %s10
  %v14 = vstv %s8
  %15 = vst [vmem:[#allocation3] sm:$0x1] %v14
  // Predicated region
  $region2: #{tpu_custom_call.1} parent=0 // pred_check
    _
  $region3: #{tpu_custom_call.1} parent=0 // pred_check_branch
    %17 = sbr.rel (0) target = $region5
  $region4: #{tpu_custom_call.1} parent=0 // pred_region
    _
  $region5: #{tpu_custom_call.1} parent=0 // pred_fallthru
    _
  // Predicated region
  $region6: #{tpu_custom_call.1} parent=0 // pred_check
    _
  $region7: #{tpu_custom_call.1} parent=0 // pred_check_branch
    %19 = sbr.rel (0) target = $region9
  $region8: #{tpu_custom_call.1} parent=0 // pred_region
    _
  $region9: #{tpu_custom_call.1} parent=0 // pred_fallthru
    _
  // Predicated region
  $region10: #{tpu_custom_call.1} parent=0 // pred_check
    _
  $region11: #{tpu_custom_call.1} parent=0 // pred_check_branch
    %21 = sbr.rel (0) target = $region13
  $region12: #{tpu_custom_call.1} parent=0 // pred_region
    _
  $region13: #{tpu_custom_call.1} parent=0 // pred_fallthru
    _
  // Predicated region
  $region14: #{tpu_custom_call.1} parent=0 // pred_check
    _
  $region15: #{tpu_custom_call.1} parent=0 // pred_check_branch
    %23 = sbr.rel (0) target = $region17
  $region16: #{tpu_custom_call.1} parent=0 // pred_region
    _
  $region17: #{tpu_custom_call.1} parent=0 // pred_fallthru
    _
  // Predicated region
  $region18: #{tpu_custom_call.1} parent=0 // pred_check
    _
  $region19: #{tpu_custom_call.1} parent=0 // pred_check_branch
    %25 = sbr.rel (0) target = $region21
  $region20: #{tpu_custom_call.1} parent=0 // pred_region
    _
  $region21: #{tpu_custom_call.1} parent=0 // pred_fallthru
    _
  // Predicated region
  $region22: #{tpu_custom_call.1} parent=0 // pred_check
    _
  $region23: #{tpu_custom_call.1} parent=0 // pred_check_branch
    %27 = sbr.rel (0) target = $region25
  $region24: #{tpu_custom_call.1} parent=0 // pred_region
    _
  $region25: #{tpu_custom_call.1} parent=0 // pred_fallthru
    _
  // Predicated region
  $region26: #{tpu_custom_call.1} parent=0 // pred_check
    _
  $region27: #{tpu_custom_call.1} parent=0 // pred_check_branch
    %29 = sbr.rel (0) target = $region29
  $region28: #{tpu_custom_call.1} parent=0 // pred_region
    _
  $region29: #{tpu_custom_call.1} parent=0 // pred_fallthru
    _
  // Predicated region
  $region30: #{tpu_custom_call.1} parent=0 // pred_check
    _
  $region31: #{tpu_custom_call.1} parent=0 // pred_check_branch
    %31 = sbr.rel (0) target = $region33
  $region32: #{tpu_custom_call.1} parent=0 // pred_region
    _
  $region33: #{tpu_custom_call.1} parent=0 // pred_fallthru
    _
  // Predicated region
  $region34: #{tpu_custom_call.1} parent=0 // pred_check
    _
  $region35: #{tpu_custom_call.1} parent=0 // pred_check_branch
    %33 = sbr.rel (0) target = $region37
  $region36: #{tpu_custom_call.1} parent=0 // pred_region
    _
  $region37: #{tpu_custom_call.1} parent=0 // pred_fallthru
    _
  %v34 = vld [vmem:[%s1] sm:$0xf]
  %v35 = vld [vmem:[%s2] sm:$0x1]
  %v36 = vld [vmem:[%s0] sm:$0xff]
  %v37 = vld [vmem:[%s0 + $0x8] sm:$0xff]
  %v38 = vld [vmem:[%s0 + $0x10] sm:$0xff]
  %v39 = vld [vmem:[%s0 + $0x18] sm:$0xff]
  %v40 = vld [vmem:[%s0 + $0x20] sm:$0xff]
  %v41 = vld [vmem:[%s0 + $0x28] sm:$0xff]
  %v42 = vld [vmem:[%s0 + $0x30] sm:$0xff]
  %v43 = vld [vmem:[%s0 + $0x38] sm:$0xff]
  %v45 = vlaneseq
  %v46 = vshrl.u32 %v45, 7
  %v47 = vsub.s32 0, %v46
  %v48 = vrot.slane %v35, %v47
  %vm50 = vcmask 31744
  %v52 = vsel %vm50, %v36, 0
  %v55 = vsel %vm50, %v37, 0
  %v58 = vsel %vm50, %v38, 0
  %v61 = vsel %vm50, %v39, 0
  %v64 = vsel %vm50, %v40, 0
  %v67 = vsel %vm50, %v41, 0
  %v70 = vsel %vm50, %v42, 0
  %v73 = vsel %vm50, %v43, 0
  %vm75 = vcmask 1043456
  %v77 = vsel %vm75, %v34, 0
  %79 = vmatprep.subr.mxu0 0.0
  %80 = vmatpush1.msra.mxu0 %v77
  %81 = vmatprep.subr.mxu0 0.0
  %82 = vmatpush1.msra.mxu0 0.0
  %83 = vmatprep.subr.mxu0 0.0
  %84 = vmatpush1.msra.mxu0 0.0
  %85 = vmatprep.subr.mxu0 0.0
  %86 = vmatpush1.msra.mxu0 0.0
  %87 = vmatprep.subr.mxu0 0.0
  %88 = vmatpush1.msra.mxu0 0.0
  %89 = vmatprep.subr.mxu0 0.0
  %90 = vmatpush1.msra.mxu0 0.0
  %91 = vmatprep.subr.mxu0 0.0
  %92 = vmatpush1.msra.mxu0 0.0
  %93 = vmatprep.subr.mxu0 0.0
  %94 = vmatpush1.msra.mxu0 0.0
  %95 = vmatprep.subr.mxu0 0.0
  %96 = vmatpush1.msra.mxu0 0.0
  %97 = vmatprep.subr.mxu0 0.0
  %98 = vmatpush1.msra.mxu0 0.0
  %99 = vmatprep.subr.mxu0 0.0
  %100 = vmatpush1.msra.mxu0 0.0
  %101 = vmatprep.subr.mxu0 0.0
  %102 = vmatpush1.msra.mxu0 0.0
  %103 = vmatprep.subr.mxu0 0.0
  %104 = vmatpush1.msra.mxu0 0.0
  %105 = vmatprep.subr.mxu0 0.0
  %106 = vmatpush1.msra.mxu0 0.0
  %107 = vmatprep.subr.mxu0 0.0
  %108 = vmatpush1.msra.mxu0 0.0
  %109 = vmatprep.subr.mxu0 0.0
  %110 = vmatpush1.msra.mxu0 0.0
  %111 = vmatprep.subr.mxu0 0.0
  %112 = vmatpush1.msra.mxu0 0.0
  %113 = vmatprep.subr.mxu0 0.0
  %114 = vmatpush1.msra.mxu0 0.0
  %115 = vmatprep.subr.mxu0 0.0
  %116 = vmatpush1.msra.mxu0 0.0
  %117 = vmatprep.subr.mxu0 0.0
  %118 = vmatpush1.msra.mxu0 0.0
  %119 = vmatprep.subr.mxu0 0.0
  %120 = vmatpush1.msra.mxu0 0.0
  %121 = vmatprep.subr.mxu0 0.0
  %122 = vmatpush1.msra.mxu0 0.0
  %123 = vmatprep.subr.mxu0 0.0
  %124 = vmatpush1.msra.mxu0 0.0
  %125 = vmatprep.subr.mxu0 0.0
  %126 = vmatpush1.msra.mxu0 0.0
  %127 = vmatprep.subr.mxu0 0.0
  %128 = vmatpush1.msra.mxu0 0.0
  %129 = vmatprep.subr.mxu0 0.0
  %130 = vmatpush1.msra.mxu0 0.0
  %131 = vmatprep.subr.mxu0 0.0
  %132 = vmatpush1.msra.mxu0 0.0
  %133 = vmatprep.subr.mxu0 0.0
  %134 = vmatpush1.msra.mxu0 0.0
  %135 = vmatprep.subr.mxu0 0.0
  %136 = vmatpush1.msra.mxu0 0.0
  %137 = vmatprep.subr.mxu0 0.0
  %138 = vmatpush1.msra.mxu0 0.0
  %139 = vmatprep.subr.mxu0 0.0
  %140 = vmatpush1.msra.mxu0 0.0
  %141 = vmatprep.subr.mxu0 0.0
  %142 = vmatpush1.msra.mxu0 0.0
  %143 = vmatprep.mubr.f32.mxu0 0.0
  %144 = vmatmul.mubr.f32.gmra.mrb[0].mxu0 %v52
  %v145 = vpop.f32.mrb[0].mxu0
  %v146 = vadd.f32 %v48, %v145
  %v147 = vpop.f32.mrb[0].mxu0
  %148 = vmatprep.mubr.f32.mxu0 0.0
  %149 = vmatmul.mubr.f32.gmra.mrb[0].mxu0 %v55
  %v150 = vpop.f32.mrb[0].mxu0
  %v151 = vadd.f32 %v48, %v150
  %v152 = vpop.f32.mrb[0].mxu0
  %153 = vmatprep.mubr.f32.mxu0 0.0
  %154 = vmatmul.mubr.f32.gmra.mrb[0].mxu0 %v58
  %v155 = vpop.f32.mrb[0].mxu0
  %v156 = vadd.f32 %v48, %v155
  %v157 = vpop.f32.mrb[0].mxu0
  %158 = vmatprep.mubr.f32.mxu0 0.0
  %159 = vmatmul.mubr.f32.gmra.mrb[0].mxu0 %v61
  %v160 = vpop.f32.mrb[0].mxu0
  %v161 = vadd.f32 %v48, %v160
  %v162 = vpop.f32.mrb[0].mxu0
  %163 = vmatprep.mubr.f32.mxu0 0.0
  %164 = vmatmul.mubr.f32.gmra.mrb[0].mxu0 %v64
  %v165 = vpop.f32.mrb[0].mxu0
  %v166 = vadd.f32 %v48, %v165
  %v167 = vpop.f32.mrb[0].mxu0
  %168 = vmatprep.mubr.f32.mxu0 0.0
  %169 = vmatmul.mubr.f32.gmra.mrb[0].mxu0 %v67
  %v170 = vpop.f32.mrb[0].mxu0
  %v171 = vadd.f32 %v48, %v170
  %v172 = vpop.f32.mrb[0].mxu0
  %173 = vmatprep.mubr.f32.mxu0 0.0
  %174 = vmatmul.mubr.f32.gmra.mrb[0].mxu0 %v70
  %v175 = vpop.f32.mrb[0].mxu0
  %v176 = vadd.f32 %v48, %v175
  %v177 = vpop.f32.mrb[0].mxu0
  %178 = vmatprep.mubr.f32.mxu0 0.0
  %179 = vmatmul.mubr.f32.gmra.mrb[0].mxu0 %v73
  %v180 = vpop.f32.mrb[0].mxu0
  %v181 = vadd.f32 %v48, %v180
  %v182 = vpop.f32.mrb[0].mxu0
  %183 = vdwg.mxu0
  %184 = vst [vmem:[#allocation2] sm:$0xff] %v146
  %185 = vst [vmem:[#allocation2 + $0x8] sm:$0xff] %v151
  %186 = vst [vmem:[#allocation2 + $0x10] sm:$0xff] %v156
  %187 = vst [vmem:[#allocation2 + $0x18] sm:$0xff] %v161
  %188 = vst [vmem:[#allocation2 + $0x20] sm:$0xff] %v166
  %189 = vst [vmem:[#allocation2 + $0x28] sm:$0xff] %v171
  %190 = vst [vmem:[#allocation2 + $0x30] sm:$0xff] %v176
  %191 = vst [vmem:[#allocation2 + $0x38] sm:$0xff] %v181
  %v192 = vld [vmem:[%s3] sm:$0xff]
  %v193 = vld [vmem:[%s3 + $0x8] sm:$0xff]
  %v194 = vld [vmem:[%s3 + $0x10] sm:$0xff]
  %v195 = vld [vmem:[%s3 + $0x18] sm:$0xff]
  %v196 = vld [vmem:[%s4] sm:$0xff]
  %v197 = vld [vmem:[%s4 + $0x8] sm:$0xff]
  %v198 = vld [vmem:[%s4 + $0x10] sm:$0xff]
  %v199 = vld [vmem:[%s4 + $0x18] sm:$0xff]
  %v200 = vld [vmem:[%s5] sm:$0xff]
  %v201 = vld [vmem:[%s5 + $0x8] sm:$0xff]
  %v202 = vld [vmem:[%s5 + $0x10] sm:$0xff]
  %v203 = vld [vmem:[%s5 + $0x18] sm:$0xff]
  %v204 = vld [vmem:[%s6] sm:$0x1]
  %v206 = vlaneseq
  %v207 = vshrl.u32 %v206, 7
  %v208 = vsub.s32 0, %v207
  %v209 = vrot.slane %v204, %v208
  %vm211 = vcmask 261120
  %v213 = vsel %vm211, 0.0, 0
  %215 = vmatprep.subr.mxu0 0.0
  %216 = vmatpush1.msra.mxu0 %v200
  %217 = vmatprep.subr.mxu0 0.0
  %218 = vmatpush1.msra.mxu0 %v201
  %219 = vmatprep.subr.mxu0 0.0
  %220 = vmatpush1.msra.mxu0 %v202
  %221 = vmatprep.subr.mxu0 0.0
  %222 = vmatpush1.msra.mxu0 %v203
  %223 = vmatprep.subr.mxu0 0.0
  %224 = vmatpush1.msra.mxu0 0.0
  %225 = vmatprep.subr.mxu0 0.0
  %226 = vmatpush1.msra.mxu0 0.0
  %227 = vmatprep.subr.mxu0 0.0
  %228 = vmatpush1.msra.mxu0 0.0
  %229 = vmatprep.subr.mxu0 0.0
  %230 = vmatpush1.msra.mxu0 0.0
  %231 = vmatprep.subr.mxu0 0.0
  %232 = vmatpush1.msra.mxu0 0.0
  %233 = vmatprep.subr.mxu0 0.0
  %234 = vmatpush1.msra.mxu0 0.0
  %235 = vmatprep.subr.mxu0 0.0
  %236 = vmatpush1.msra.mxu0 0.0
  %237 = vmatprep.subr.mxu0 0.0
  %238 = vmatpush1.msra.mxu0 0.0
  %239 = vmatprep.subr.mxu0 0.0
  %240 = vmatpush1.msra.mxu0 0.0
  %241 = vmatprep.subr.mxu0 0.0
  %242 = vmatpush1.msra.mxu0 0.0
  %243 = vmatprep.subr.mxu0 0.0
  %244 = vmatpush1.msra.mxu0 0.0
  %245 = vmatprep.subr.mxu0 0.0
  %246 = vmatpush1.msra.mxu0 0.0
  %247 = vmatprep.subr.mxu0 0.0
  %248 = vmatpush1.msra.mxu0 0.0
  %249 = vmatprep.subr.mxu0 0.0
  %250 = vmatpush1.msra.mxu0 0.0
  %251 = vmatprep.subr.mxu0 0.0
  %252 = vmatpush1.msra.mxu0 0.0
  %253 = vmatprep.subr.mxu0 0.0
  %254 = vmatpush1.msra.mxu0 0.0
  %255 = vmatprep.subr.mxu0 0.0
  %256 = vmatpush1.msra.mxu0 0.0
  %257 = vmatprep.subr.mxu0 0.0
  %258 = vmatpush1.msra.mxu0 0.0
  %259 = vmatprep.subr.mxu0 0.0
  %260 = vmatpush1.msra.mxu0 0.0
  %261 = vmatprep.subr.mxu0 0.0
  %262 = vmatpush1.msra.mxu0 0.0
  %263 = vmatprep.subr.mxu0 0.0
  %264 = vmatpush1.msra.mxu0 0.0
  %265 = vmatprep.subr.mxu0 0.0
  %266 = vmatpush1.msra.mxu0 0.0
  %267 = vmatprep.subr.mxu0 0.0
  %268 = vmatpush1.msra.mxu0 0.0
  %269 = vmatprep.subr.mxu0 0.0
  %270 = vmatpush1.msra.mxu0 0.0
  %271 = vmatprep.subr.mxu0 0.0
  %272 = vmatpush1.msra.mxu0 0.0
  %273 = vmatprep.subr.mxu0 0.0
  %274 = vmatpush1.msra.mxu0 0.0
  %275 = vmatprep.subr.mxu0 0.0
  %276 = vmatpush1.msra.mxu0 0.0
  %277 = vmatprep.subr.mxu0 0.0
  %278 = vmatpush1.msra.mxu0 0.0
  %279 = vmatprep.mubr.f32.mxu0 0.0
  %280 = vmatmul.mubr.f32.gmra.mrb[0].mxu0 %v213
  %v281 = vpop.f32.mrb[0].mxu0
  %v282 = vadd.f32 0.0, %v281
  %v283 = vpop.f32.mrb[0].mxu0
  %284 = vdwg.mxu0
  %v285 = vld [vmem:[#allocation2] sm:$0xff]
  %286 = vmatprep.subr.mxu0 0.0
  %287 = vmatpush1.msra.mxu0 %v192
  %288 = vmatprep.subr.mxu0 0.0
  %289 = vmatpush1.msra.mxu0 %v193
  %290 = vmatprep.subr.mxu0 0.0
  %291 = vmatpush1.msra.mxu0 %v194
  %292 = vmatprep.subr.mxu0 0.0
  %293 = vmatpush1.msra.mxu0 %v195
  %294 = vmatprep.subr.mxu0 0.0
  %295 = vmatpush1.msra.mxu0 0.0
  %296 = vmatprep.subr.mxu0 0.0
  %297 = vmatpush1.msra.mxu0 0.0
  %298 = vmatprep.subr.mxu0 0.0
  %299 = vmatpush1.msra.mxu0 0.0
  %300 = vmatprep.subr.mxu0 0.0
  %301 = vmatpush1.msra.mxu0 0.0
  %302 = vmatprep.subr.mxu0 0.0
  %303 = vmatpush1.msra.mxu0 0.0
  %304 = vmatprep.subr.mxu0 0.0
  %305 = vmatpush1.msra.mxu0 0.0
  %306 = vmatprep.subr.mxu0 0.0
  %307 = vmatpush1.msra.mxu0 0.0
  %308 = vmatprep.subr.mxu0 0.0
  %309 = vmatpush1.msra.mxu0 0.0
  %310 = vmatprep.subr.mxu0 0.0
  %311 = vmatpush1.msra.mxu0 0.0
  %312 = vmatprep.subr.mxu0 0.0
  %313 = vmatpush1.msra.mxu0 0.0
  %314 = vmatprep.subr.mxu0 0.0
  %315 = vmatpush1.msra.mxu0 0.0
  %316 = vmatprep.subr.mxu0 0.0
  %317 = vmatpush1.msra.mxu0 0.0
  %318 = vmatprep.subr.mxu0 0.0
  %319 = vmatpush1.msra.mxu0 0.0
  %320 = vmatprep.subr.mxu0 0.0
  %321 = vmatpush1.msra.mxu0 0.0
  %322 = vmatprep.subr.mxu0 0.0
  %323 = vmatpush1.msra.mxu0 0.0
  %324 = vmatprep.subr.mxu0 0.0
  %325 = vmatpush1.msra.mxu0 0.0
  %326 = vmatprep.subr.mxu0 0.0
  %327 = vmatpush1.msra.mxu0 0.0
  %328 = vmatprep.subr.mxu0 0.0
  %329 = vmatpush1.msra.mxu0 0.0
  %330 = vmatprep.subr.mxu0 0.0
  %331 = vmatpush1.msra.mxu0 0.0
  %332 = vmatprep.subr.mxu0 0.0
  %333 = vmatpush1.msra.mxu0 0.0
  %334 = vmatprep.subr.mxu0 0.0
  %335 = vmatpush1.msra.mxu0 0.0
  %336 = vmatprep.subr.mxu0 0.0
  %337 = vmatpush1.msra.mxu0 0.0
  %338 = vmatprep.subr.mxu0 0.0
  %339 = vmatpush1.msra.mxu0 0.0
  %340 = vmatprep.subr.mxu0 0.0
  %341 = vmatpush1.msra.mxu0 0.0
  %342 = vmatprep.subr.mxu0 0.0
  %343 = vmatpush1.msra.mxu0 0.0
  %344 = vmatprep.subr.mxu0 0.0
  %345 = vmatpush1.msra.mxu0 0.0
  %346 = vmatprep.subr.mxu0 0.0
  %347 = vmatpush1.msra.mxu0 0.0
  %348 = vmatprep.subr.mxu0 0.0
  %349 = vmatpush1.msra.mxu0 0.0
  %350 = vmatprep.mubr.f32.mxu0 0.0
  %351 = vmatmul.mubr.f32.gmra.mrb[0].mxu0 %v213
  %v352 = vpop.f32.mrb[0].mxu0
  %v353 = vadd.f32 0.0, %v352
  %v354 = vpop.f32.mrb[0].mxu0
  %355 = vdwg.mxu0
  %v356 = vadd.f32 %v285, %v353
  %v357 = vxor.u32 %v356, 2147483648
  %v358 = vmul.f32 %v357, 1.442695
  %v359 = vpow.pop %v358
  %v360 = vadd.f32 %v359, 1.0
  %v361 = vrcp.pop %v360
  %v362 = vmul.f32 1.0, %v361
  %v363 = vtanh.pop %v356
  %v364 = vmul.f32 %v362, 0.0
  %366 = vrot.lane.b32.xlu0 %v363, 32
  %v367 = vpop.permute.xlu0 %366
  %v369 = vmul.f32 %v362, %v367
  %371 = vrot.lane.b32.xlu0 %v369, 32
  %v372 = vpop.permute.xlu0 %371
  %v374 = vadd.f32 %v364, %v372
  %v375 = vtanh.pop %v374
  %377 = vrot.lane.b32.xlu0 %v375, 32
  %v378 = vpop.permute.xlu0 %377
  %v380 = vmul.f32 %v362, %v378
  %382 = vrot.lane.b32.xlu0 %v380, 64
  %v383 = vpop.permute.xlu0 %382
  %v384 = vsel %vm211, %v383, 0
  %386 = vmatprep.subr.mxu0 0.0
  %387 = vmatpush1.msra.mxu0 %v196
  %388 = vmatprep.subr.mxu0 0.0
  %389 = vmatpush1.msra.mxu0 %v197
  %390 = vmatprep.subr.mxu0 0.0
  %391 = vmatpush1.msra.mxu0 %v198
  %392 = vmatprep.subr.mxu0 0.0
  %393 = vmatpush1.msra.mxu0 %v199
  %394 = vmatprep.subr.mxu0 0.0
  %395 = vmatpush1.msra.mxu0 0.0
  %396 = vmatprep.subr.mxu0 0.0
  %397 = vmatpush1.msra.mxu0 0.0
  %398 = vmatprep.subr.mxu0 0.0
  %399 = vmatpush1.msra.mxu0 0.0
  %400 = vmatprep.subr.mxu0 0.0
  %401 = vmatpush1.msra.mxu0 0.0
  %402 = vmatprep.subr.mxu0 0.0
  %403 = vmatpush1.msra.mxu0 0.0
  %404 = vmatprep.subr.mxu0 0.0
  %405 = vmatpush1.msra.mxu0 0.0
  %406 = vmatprep.subr.mxu0 0.0
  %407 = vmatpush1.msra.mxu0 0.0
  %408 = vmatprep.subr.mxu0 0.0
  %409 = vmatpush1.msra.mxu0 0.0
  %410 = vmatprep.subr.mxu0 0.0
  %411 = vmatpush1.msra.mxu0 0.0
  %412 = vmatprep.subr.mxu0 0.0
  %413 = vmatpush1.msra.mxu0 0.0
  %414 = vmatprep.subr.mxu0 0.0
  %415 = vmatpush1.msra.mxu0 0.0
  %416 = vmatprep.subr.mxu0 0.0
  %417 = vmatpush1.msra.mxu0 0.0
  %418 = vmatprep.subr.mxu0 0.0
  %419 = vmatpush1.msra.mxu0 0.0
  %420 = vmatprep.subr.mxu0 0.0
  %421 = vmatpush1.msra.mxu0 0.0
  %422 = vmatprep.subr.mxu0 0.0
  %423 = vmatpush1.msra.mxu0 0.0
  %424 = vmatprep.subr.mxu0 0.0
  %425 = vmatpush1.msra.mxu0 0.0
  %426 = vmatprep.subr.mxu0 0.0
  %427 = vmatpush1.msra.mxu0 0.0
  %428 = vmatprep.subr.mxu0 0.0
  %429 = vmatpush1.msra.mxu0 0.0
  %430 = vmatprep.subr.mxu0 0.0
  %431 = vmatpush1.msra.mxu0 0.0
  %432 = vmatprep.subr.mxu0 0.0
  %433 = vmatpush1.msra.mxu0 0.0
  %434 = vmatprep.subr.mxu0 0.0
  %435 = vmatpush1.msra.mxu0 0.0
  %436 = vmatprep.subr.mxu0 0.0
  %437 = vmatpush1.msra.mxu0 0.0
  %438 = vmatprep.subr.mxu0 0.0
  %439 = vmatpush1.msra.mxu0 0.0
  %440 = vmatprep.subr.mxu0 0.0
  %441 = vmatpush1.msra.mxu0 0.0
  %442 = vmatprep.subr.mxu0 0.0
  %443 = vmatpush1.msra.mxu0 0.0
  %444 = vmatprep.subr.mxu0 0.0
  %445 = vmatpush1.msra.mxu0 0.0
  %446 = vmatprep.subr.mxu0 0.0
  %447 = vmatpush1.msra.mxu0 0.0
  %448 = vmatprep.subr.mxu0 0.0
  %449 = vmatpush1.msra.mxu0 0.0
  %450 = vmatprep.mubr.f32.mxu0 0.0
  %451 = vmatmul.mubr.f32.gmra.mrb[0].mxu0 %v384
  %v452 = vpop.f32.mrb[0].mxu0
  %v453 = vadd.f32 %v282, %v452
  %v454 = vpop.f32.mrb[0].mxu0
  %455 = vdwg.mxu0
  %v456 = vadd.f32 %v453, %v209
  %v457 = vxor.u32 %v456, 2147483648
  %v458 = vmul.f32 %v457, 1.442695
  %v459 = vpow.pop %v458
  %v460 = vadd.f32 %v459, 1.0
  %v461 = vrcp.pop %v460
  %v462 = vmul.f32 1.0, %v461
  %v463 = vtanh.pop %v456
  %v464 = vmul.f32 %v462, 0.0
  %466 = vrot.lane.b32.xlu0 %v463, 32
  %v467 = vpop.permute.xlu0 %466
  %v469 = vmul.f32 %v462, %v467
  %471 = vrot.lane.b32.xlu0 %v469, 32
  %v472 = vpop.permute.xlu0 %471
  %v474 = vadd.f32 %v464, %v472
  %v475 = vtanh.pop %v474
  %477 = vrot.lane.b32.xlu0 %v475, 32
  %v478 = vpop.permute.xlu0 %477
  %v480 = vmul.f32 %v462, %v478
  %482 = vrot.lane.b32.xlu0 %v480, 64
  %v483 = vpop.permute.xlu0 %482
  %v484 = vsel %vm211, %v483, 0
  %486 = vmatprep.subr.mxu0 0.0
  %487 = vmatpush1.msra.mxu0 %v200
  %488 = vmatprep.subr.mxu0 0.0
  %489 = vmatpush1.msra.mxu0 %v201
  %490 = vmatprep.subr.mxu0 0.0
  %491 = vmatpush1.msra.mxu0 %v202
  %492 = vmatprep.subr.mxu0 0.0
  %493 = vmatpush1.msra.mxu0 %v203
  %494 = vmatprep.subr.mxu0 0.0
  %495 = vmatpush1.msra.mxu0 0.0
  %496 = vmatprep.subr.mxu0 0.0
  %497 = vmatpush1.msra.mxu0 0.0
  %498 = vmatprep.subr.mxu0 0.0
  %499 = vmatpush1.msra.mxu0 0.0
  %500 = vmatprep.subr.mxu0 0.0
  %501 = vmatpush1.msra.mxu0 0.0
  %502 = vmatprep.subr.mxu0 0.0
  %503 = vmatpush1.msra.mxu0 0.0
  %504 = vmatprep.subr.mxu0 0.0
  %505 = vmatpush1.msra.mxu0 0.0
  %506 = vmatprep.subr.mxu0 0.0
  %507 = vmatpush1.msra.mxu0 0.0
  %508 = vmatprep.subr.mxu0 0.0
  %509 = vmatpush1.msra.mxu0 0.0
  %510 = vmatprep.subr.mxu0 0.0
  %511 = vmatpush1.msra.mxu0 0.0
  %512 = vmatprep.subr.mxu0 0.0
  %513 = vmatpush1.msra.mxu0 0.0
  %514 = vmatprep.subr.mxu0 0.0
  %515 = vmatpush1.msra.mxu0 0.0
  %516 = vmatprep.subr.mxu0 0.0
  %517 = vmatpush1.msra.mxu0 0.0
  %518 = vmatprep.subr.mxu0 0.0
  %519 = vmatpush1.msra.mxu0 0.0
  %520 = vmatprep.subr.mxu0 0.0
  %521 = vmatpush1.msra.mxu0 0.0
  %522 = vmatprep.subr.mxu0 0.0
  %523 = vmatpush1.msra.mxu0 0.0
  %524 = vmatprep.subr.mxu0 0.0
  %525 = vmatpush1.msra.mxu0 0.0
  %526 = vmatprep.subr.mxu0 0.0
  %527 = vmatpush1.msra.mxu0 0.0
  %528 = vmatprep.subr.mxu0 0.0
  %529 = vmatpush1.msra.mxu0 0.0
  %530 = vmatprep.subr.mxu0 0.0
  %531 = vmatpush1.msra.mxu0 0.0
  %532 = vmatprep.subr.mxu0 0.0
  %533 = vmatpush1.msra.mxu0 0.0
  %534 = vmatprep.subr.mxu0 0.0
  %535 = vmatpush1.msra.mxu0 0.0
  %536 = vmatprep.subr.mxu0 0.0
  %537 = vmatpush1.msra.mxu0 0.0
  %538 = vmatprep.subr.mxu0 0.0
  %539 = vmatpush1.msra.mxu0 0.0
  %540 = vmatprep.subr.mxu0 0.0
  %541 = vmatpush1.msra.mxu0 0.0
  %542 = vmatprep.subr.mxu0 0.0
  %543 = vmatpush1.msra.mxu0 0.0
  %544 = vmatprep.subr.mxu0 0.0
  %545 = vmatpush1.msra.mxu0 0.0
  %546 = vmatprep.subr.mxu0 0.0
  %547 = vmatpush1.msra.mxu0 0.0
  %548 = vmatprep.subr.mxu0 0.0
  %549 = vmatpush1.msra.mxu0 0.0
  %550 = vmatprep.mubr.f32.mxu0 0.0
  %551 = vmatmul.mubr.f32.gmra.mrb[0].mxu0 %v484
  %v552 = vpop.f32.mrb[0].mxu0
  %v553 = vadd.f32 0.0, %v552
  %v554 = vpop.f32.mrb[0].mxu0
  %555 = vdwg.mxu0
  %s556 = scalar_lea.vmem [#allocation2], 8
  %v557 = vld [vmem:[%s556] sm:$0xff]
  %558 = vmatprep.subr.mxu0 0.0
  %559 = vmatpush1.msra.mxu0 %v192
  %560 = vmatprep.subr.mxu0 0.0
  %561 = vmatpush1.msra.mxu0 %v193
  %562 = vmatprep.subr.mxu0 0.0
  %563 = vmatpush1.msra.mxu0 %v194
  %564 = vmatprep.subr.mxu0 0.0
  %565 = vmatpush1.msra.mxu0 %v195
  %566 = vmatprep.subr.mxu0 0.0
  %567 = vmatpush1.msra.mxu0 0.0
  %568 = vmatprep.subr.mxu0 0.0
  %569 = vmatpush1.msra.mxu0 0.0
  %570 = vmatprep.subr.mxu0 0.0
  %571 = vmatpush1.msra.mxu0 0.0
  %572 = vmatprep.subr.mxu0 0.0
  %573 = vmatpush1.msra.mxu0 0.0
  %574 = vmatprep.subr.mxu0 0.0
  %575 = vmatpush1.msra.mxu0 0.0
  %576 = vmatprep.subr.mxu0 0.0
  %577 = vmatpush1.msra.mxu0 0.0
  %578 = vmatprep.subr.mxu0 0.0
  %579 = vmatpush1.msra.mxu0 0.0
  %580 = vmatprep.subr.mxu0 0.0
  %581 = vmatpush1.msra.mxu0 0.0
  %582 = vmatprep.subr.mxu0 0.0
  %583 = vmatpush1.msra.mxu0 0.0
  %584 = vmatprep.subr.mxu0 0.0
  %585 = vmatpush1.msra.mxu0 0.0
  %586 = vmatprep.subr.mxu0 0.0
  %587 = vmatpush1.msra.mxu0 0.0
  %588 = vmatprep.subr.mxu0 0.0
  %589 = vmatpush1.msra.mxu0 0.0
  %590 = vmatprep.subr.mxu0 0.0
  %591 = vmatpush1.msra.mxu0 0.0
  %592 = vmatprep.subr.mxu0 0.0
  %593 = vmatpush1.msra.mxu0 0.0
  %594 = vmatprep.subr.mxu0 0.0
  %595 = vmatpush1.msra.mxu0 0.0
  %596 = vmatprep.subr.mxu0 0.0
  %597 = vmatpush1.msra.mxu0 0.0
  %598 = vmatprep.subr.mxu0 0.0
  %599 = vmatpush1.msra.mxu0 0.0
  %600 = vmatprep.subr.mxu0 0.0
  %601 = vmatpush1.msra.mxu0 0.0
  %602 = vmatprep.subr.mxu0 0.0
  %603 = vmatpush1.msra.mxu0 0.0
  %604 = vmatprep.subr.mxu0 0.0
  %605 = vmatpush1.msra.mxu0 0.0
  %606 = vmatprep.subr.mxu0 0.0
  %607 = vmatpush1.msra.mxu0 0.0
  %608 = vmatprep.subr.mxu0 0.0
  %609 = vmatpush1.msra.mxu0 0.0
  %610 = vmatprep.subr.mxu0 0.0
  %611 = vmatpush1.msra.mxu0 0.0
  %612 = vmatprep.subr.mxu0 0.0
  %613 = vmatpush1.msra.mxu0 0.0
  %614 = vmatprep.subr.mxu0 0.0
  %615 = vmatpush1.msra.mxu0 0.0
  %616 = vmatprep.subr.mxu0 0.0
  %617 = vmatpush1.msra.mxu0 0.0
  %618 = vmatprep.subr.mxu0 0.0
  %619 = vmatpush1.msra.mxu0 0.0
  %620 = vmatprep.subr.mxu0 0.0
  %621 = vmatpush1.msra.mxu0 0.0
  %622 = vmatprep.mubr.f32.mxu0 0.0
  %623 = vmatmul.mubr.f32.gmra.mrb[0].mxu0 %v384
  %v624 = vpop.f32.mrb[0].mxu0
  %v625 = vadd.f32 0.0, %v624
  %v626 = vpop.f32.mrb[0].mxu0
  %627 = vdwg.mxu0
  %v628 = vadd.f32 %v557, %v625
  %v629 = vxor.u32 %v628, 2147483648
  %v630 = vmul.f32 %v629, 1.442695
  %v631 = vpow.pop %v630
  %v632 = vadd.f32 %v631, 1.0
  %v633 = vrcp.pop %v632
  %v634 = vmul.f32 1.0, %v633
  %v635 = vtanh.pop %v628
  %v636 = vmul.f32 %v634, %v374
  %638 = vrot.lane.b32.xlu0 %v635, 32
  %v639 = vpop.permute.xlu0 %638
  %v641 = vmul.f32 %v634, %v639
  %643 = vrot.lane.b32.xlu0 %v641, 32
  %v644 = vpop.permute.xlu0 %643
  %v646 = vadd.f32 %v636, %v644
  %v647 = vtanh.pop %v646
  %649 = vrot.lane.b32.xlu0 %v647, 32
  %v650 = vpop.permute.xlu0 %649
  %v652 = vmul.f32 %v634, %v650
  %654 = vrot.lane.b32.xlu0 %v652, 64
  %v655 = vpop.permute.xlu0 %654
  %v656 = vsel %vm211, %v655, 0
  %658 = vmatprep.subr.mxu0 0.0
  %659 = vmatpush1.msra.mxu0 %v196
  %660 = vmatprep.subr.mxu0 0.0
  %661 = vmatpush1.msra.mxu0 %v197
  %662 = vmatprep.subr.mxu0 0.0
  %663 = vmatpush1.msra.mxu0 %v198
  %664 = vmatprep.subr.mxu0 0.0
  %665 = vmatpush1.msra.mxu0 %v199
  %666 = vmatprep.subr.mxu0 0.0
  %667 = vmatpush1.msra.mxu0 0.0
  %668 = vmatprep.subr.mxu0 0.0
  %669 = vmatpush1.msra.mxu0 0.0
  %670 = vmatprep.subr.mxu0 0.0
  %671 = vmatpush1.msra.mxu0 0.0
  %672 = vmatprep.subr.mxu0 0.0
  %673 = vmatpush1.msra.mxu0 0.0
  %674 = vmatprep.subr.mxu0 0.0
  %675 = vmatpush1.msra.mxu0 0.0
  %676 = vmatprep.subr.mxu0 0.0
  %677 = vmatpush1.msra.mxu0 0.0
  %678 = vmatprep.subr.mxu0 0.0
  %679 = vmatpush1.msra.mxu0 0.0
  %680 = vmatprep.subr.mxu0 0.0
  %681 = vmatpush1.msra.mxu0 0.0
  %682 = vmatprep.subr.mxu0 0.0
  %683 = vmatpush1.msra.mxu0 0.0
  %684 = vmatprep.subr.mxu0 0.0
  %685 = vmatpush1.msra.mxu0 0.0
  %686 = vmatprep.subr.mxu0 0.0
  %687 = vmatpush1.msra.mxu0 0.0
  %688 = vmatprep.subr.mxu0 0.0
  %689 = vmatpush1.msra.mxu0 0.0
  %690 = vmatprep.subr.mxu0 0.0
  %691 = vmatpush1.msra.mxu0 0.0
  %692 = vmatprep.subr.mxu0 0.0
  %693 = vmatpush1.msra.mxu0 0.0
  %694 = vmatprep.subr.mxu0 0.0
  %695 = vmatpush1.msra.mxu0 0.0
  %696 = vmatprep.subr.mxu0 0.0
  %697 = vmatpush1.msra.mxu0 0.0
  %698 = vmatprep.subr.mxu0 0.0
  %699 = vmatpush1.msra.mxu0 0.0
  %700 = vmatprep.subr.mxu0 0.0
  %701 = vmatpush1.msra.mxu0 0.0
  %702 = vmatprep.subr.mxu0 0.0
  %703 = vmatpush1.msra.mxu0 0.0
  %704 = vmatprep.subr.mxu0 0.0
  %705 = vmatpush1.msra.mxu0 0.0
  %706 = vmatprep.subr.mxu0 0.0
  %707 = vmatpush1.msra.mxu0 0.0
  %708 = vmatprep.subr.mxu0 0.0
  %709 = vmatpush1.msra.mxu0 0.0
  %710 = vmatprep.subr.mxu0 0.0
  %711 = vmatpush1.msra.mxu0 0.0
  %712 = vmatprep.subr.mxu0 0.0
  %713 = vmatpush1.msra.mxu0 0.0
  %714 = vmatprep.subr.mxu0 0.0
  %715 = vmatpush1.msra.mxu0 0.0
  %716 = vmatprep.subr.mxu0 0.0
  %717 = vmatpush1.msra.mxu0 0.0
  %718 = vmatprep.subr.mxu0 0.0
  %719 = vmatpush1.msra.mxu0 0.0
  %720 = vmatprep.subr.mxu0 0.0
  %721 = vmatpush1.msra.mxu0 0.0
  %722 = vmatprep.mubr.f32.mxu0 0.0
  %723 = vmatmul.mubr.f32.gmra.mrb[0].mxu0 %v656
  %v724 = vpop.f32.mrb[0].mxu0
  %v725 = vadd.f32 %v553, %v724
  %v726 = vpop.f32.mrb[0].mxu0
  %727 = vdwg.mxu0
  %v728 = vadd.f32 %v725, %v209
  %v729 = vxor.u32 %v728, 2147483648
  %v730 = vmul.f32 %v729, 1.442695
  %v731 = vpow.pop %v730
  %v732 = vadd.f32 %v731, 1.0
  %v733 = vrcp.pop %v732
  %v734 = vmul.f32 1.0, %v733
  %v735 = vtanh.pop %v728
  %v736 = vmul.f32 %v734, %v474
  %738 = vrot.lane.b32.xlu0 %v735, 32
  %v739 = vpop.permute.xlu0 %738
  %v741 = vmul.f32 %v734, %v739
  %743 = vrot.lane.b32.xlu0 %v741, 32
  %v744 = vpop.permute.xlu0 %743
  %v746 = vadd.f32 %v736, %v744
  %v747 = vtanh.pop %v746
  %749 = vrot.lane.b32.xlu0 %v747, 32
  %v750 = vpop.permute.xlu0 %749
  %v752 = vmul.f32 %v734, %v750
  %754 = vrot.lane.b32.xlu0 %v752, 64
  %v755 = vpop.permute.xlu0 %754
  %v756 = vsel %vm211, %v755, 0
  %758 = vmatprep.subr.mxu0 0.0
  %759 = vmatpush1.msra.mxu0 %v200
  %760 = vmatprep.subr.mxu0 0.0
  %761 = vmatpush1.msra.mxu0 %v201
  %762 = vmatprep.subr.mxu0 0.0
  %763 = vmatpush1.msra.mxu0 %v202
  %764 = vmatprep.subr.mxu0 0.0
  %765 = vmatpush1.msra.mxu0 %v203
  %766 = vmatprep.subr.mxu0 0.0
  %767 = vmatpush1.msra.mxu0 0.0
  %768 = vmatprep.subr.mxu0 0.0
  %769 = vmatpush1.msra.mxu0 0.0
  %770 = vmatprep.subr.mxu0 0.0
  %771 = vmatpush1.msra.mxu0 0.0
  %772 = vmatprep.subr.mxu0 0.0
  %773 = vmatpush1.msra.mxu0 0.0
  %774 = vmatprep.subr.mxu0 0.0
  %775 = vmatpush1.msra.mxu0 0.0
  %776 = vmatprep.subr.mxu0 0.0
  %777 = vmatpush1.msra.mxu0 0.0
  %778 = vmatprep.subr.mxu0 0.0
  %779 = vmatpush1.msra.mxu0 0.0
  %780 = vmatprep.subr.mxu0 0.0
  %781 = vmatpush1.msra.mxu0 0.0
  %782 = vmatprep.subr.mxu0 0.0
  %783 = vmatpush1.msra.mxu0 0.0
  %784 = vmatprep.subr.mxu0 0.0
  %785 = vmatpush1.msra.mxu0 0.0
  %786 = vmatprep.subr.mxu0 0.0
  %787 = vmatpush1.msra.mxu0 0.0
  %788 = vmatprep.subr.mxu0 0.0
  %789 = vmatpush1.msra.mxu0 0.0
  %790 = vmatprep.subr.mxu0 0.0
  %791 = vmatpush1.msra.mxu0 0.0
  %792 = vmatprep.subr.mxu0 0.0
  %793 = vmatpush1.msra.mxu0 0.0
  %794 = vmatprep.subr.mxu0 0.0
  %795 = vmatpush1.msra.mxu0 0.0
  %796 = vmatprep.subr.mxu0 0.0
  %797 = vmatpush1.msra.mxu0 0.0
  %798 = vmatprep.subr.mxu0 0.0
  %799 = vmatpush1.msra.mxu0 0.0
  %800 = vmatprep.subr.mxu0 0.0
  %801 = vmatpush1.msra.mxu0 0.0
  %802 = vmatprep.subr.mxu0 0.0
  %803 = vmatpush1.msra.mxu0 0.0
  %804 = vmatprep.subr.mxu0 0.0
  %805 = vmatpush1.msra.mxu0 0.0
  %806 = vmatprep.subr.mxu0 0.0
  %807 = vmatpush1.msra.mxu0 0.0
  %808 = vmatprep.subr.mxu0 0.0
  %809 = vmatpush1.msra.mxu0 0.0
  %810 = vmatprep.subr.mxu0 0.0
  %811 = vmatpush1.msra.mxu0 0.0
  %812 = vmatprep.subr.mxu0 0.0
  %813 = vmatpush1.msra.mxu0 0.0
  %814 = vmatprep.subr.mxu0 0.0
  %815 = vmatpush1.msra.mxu0 0.0
  %816 = vmatprep.subr.mxu0 0.0
  %817 = vmatpush1.msra.mxu0 0.0
  %818 = vmatprep.subr.mxu0 0.0
  %819 = vmatpush1.msra.mxu0 0.0
  %820 = vmatprep.subr.mxu0 0.0
  %821 = vmatpush1.msra.mxu0 0.0
  %822 = vmatprep.mubr.f32.mxu0 0.0
  %823 = vmatmul.mubr.f32.gmra.mrb[0].mxu0 %v756
  %v824 = vpop.f32.mrb[0].mxu0
  %v825 = vadd.f32 0.0, %v824
  %v826 = vpop.f32.mrb[0].mxu0
  %827 = vdwg.mxu0
  %s828 = scalar_lea.vmem [#allocation2], 16
  %v829 = vld [vmem:[%s828] sm:$0xff]
  %830 = vmatprep.subr.mxu0 0.0
  %831 = vmatpush1.msra.mxu0 %v192
  %832 = vmatprep.subr.mxu0 0.0
  %833 = vmatpush1.msra.mxu0 %v193
  %834 = vmatprep.subr.mxu0 0.0
  %835 = vmatpush1.msra.mxu0 %v194
  %836 = vmatprep.subr.mxu0 0.0
  %837 = vmatpush1.msra.mxu0 %v195
  %838 = vmatprep.subr.mxu0 0.0
  %839 = vmatpush1.msra.mxu0 0.0
  %840 = vmatprep.subr.mxu0 0.0
  %841 = vmatpush1.msra.mxu0 0.0
  %842 = vmatprep.subr.mxu0 0.0
  %843 = vmatpush1.msra.mxu0 0.0
  %844 = vmatprep.subr.mxu0 0.0
  %845 = vmatpush1.msra.mxu0 0.0
  %846 = vmatprep.subr.mxu0 0.0
  %847 = vmatpush1.msra.mxu0 0.0
  %848 = vmatprep.subr.mxu0 0.0
  %849 = vmatpush1.msra.mxu0 0.0
  %850 = vmatprep.subr.mxu0 0.0
  %851 = vmatpush1.msra.mxu0 0.0
  %852 = vmatprep.subr.mxu0 0.0
  %853 = vmatpush1.msra.mxu0 0.0
  %854 = vmatprep.subr.mxu0 0.0
  %855 = vmatpush1.msra.mxu0 0.0
  %856 = vmatprep.subr.mxu0 0.0
  %857 = vmatpush1.msra.mxu0 0.0
  %858 = vmatprep.subr.mxu0 0.0
  %859 = vmatpush1.msra.mxu0 0.0
  %860 = vmatprep.subr.mxu0 0.0
  %861 = vmatpush1.msra.mxu0 0.0
  %862 = vmatprep.subr.mxu0 0.0
  %863 = vmatpush1.msra.mxu0 0.0
  %864 = vmatprep.subr.mxu0 0.0
  %865 = vmatpush1.msra.mxu0 0.0
  %866 = vmatprep.subr.mxu0 0.0
  %867 = vmatpush1.msra.mxu0 0.0
  %868 = vmatprep.subr.mxu0 0.0
  %869 = vmatpush1.msra.mxu0 0.0
  %870 = vmatprep.subr.mxu0 0.0
  %871 = vmatpush1.msra.mxu0 0.0
  %872 = vmatprep.subr.mxu0 0.0
  %873 = vmatpush1.msra.mxu0 0.0
  %874 = vmatprep.subr.mxu0 0.0
  %875 = vmatpush1.msra.mxu0 0.0
  %876 = vmatprep.subr.mxu0 0.0
  %877 = vmatpush1.msra.mxu0 0.0
  %878 = vmatprep.subr.mxu0 0.0
  %879 = vmatpush1.msra.mxu0 0.0
  %880 = vmatprep.subr.mxu0 0.0
  %881 = vmatpush1.msra.mxu0 0.0
  %882 = vmatprep.subr.mxu0 0.0
  %883 = vmatpush1.msra.mxu0 0.0
  %884 = vmatprep.subr.mxu0 0.0
  %885 = vmatpush1.msra.mxu0 0.0
  %886 = vmatprep.subr.mxu0 0.0
  %887 = vmatpush1.msra.mxu0 0.0
  %888 = vmatprep.subr.mxu0 0.0
  %889 = vmatpush1.msra.mxu0 0.0
  %890 = vmatprep.subr.mxu0 0.0
  %891 = vmatpush1.msra.mxu0 0.0
  %892 = vmatprep.subr.mxu0 0.0
  %893 = vmatpush1.msra.mxu0 0.0
  %894 = vmatprep.mubr.f32.mxu0 0.0
  %895 = vmatmul.mubr.f32.gmra.mrb[0].mxu0 %v656
  %v896 = vpop.f32.mrb[0].mxu0
  %v897 = vadd.f32 0.0, %v896
  %v898 = vpop.f32.mrb[0].mxu0
  %899 = vdwg.mxu0
  %v900 = vadd.f32 %v829, %v897
  %v901 = vxor.u32 %v900, 2147483648
  %v902 = vmul.f32 %v901, 1.442695
  %v903 = vpow.pop %v902
  %v904 = vadd.f32 %v903, 1.0
  %v905 = vrcp.pop %v904
  %v906 = vmul.f32 1.0, %v905
  %v907 = vtanh.pop %v900
  %v908 = vmul.f32 %v906, %v646
  %910 = vrot.lane.b32.xlu0 %v907, 32
  %v911 = vpop.permute.xlu0 %910
  %v913 = vmul.f32 %v906, %v911
  %915 = vrot.lane.b32.xlu0 %v913, 32
  %v916 = vpop.permute.xlu0 %915
  %v918 = vadd.f32 %v908, %v916
  %v919 = vtanh.pop %v918
  %921 = vrot.lane.b32.xlu0 %v919, 32
  %v922 = vpop.permute.xlu0 %921
  %v924 = vmul.f32 %v906, %v922
  %926 = vrot.lane.b32.xlu0 %v924, 64
  %v927 = vpop.permute.xlu0 %926
  %v928 = vsel %vm211, %v927, 0
  %930 = vmatprep.subr.mxu0 0.0
  %931 = vmatpush1.msra.mxu0 %v196
  %932 = vmatprep.subr.mxu0 0.0
  %933 = vmatpush1.msra.mxu0 %v197
  %934 = vmatprep.subr.mxu0 0.0
  %935 = vmatpush1.msra.mxu0 %v198
  %936 = vmatprep.subr.mxu0 0.0
  %937 = vmatpush1.msra.mxu0 %v199
  %938 = vmatprep.subr.mxu0 0.0
  %939 = vmatpush1.msra.mxu0 0.0
  %940 = vmatprep.subr.mxu0 0.0
  %941 = vmatpush1.msra.mxu0 0.0
  %942 = vmatprep.subr.mxu0 0.0
  %943 = vmatpush1.msra.mxu0 0.0
  %944 = vmatprep.subr.mxu0 0.0
  %945 = vmatpush1.msra.mxu0 0.0
  %946 = vmatprep.subr.mxu0 0.0
  %947 = vmatpush1.msra.mxu0 0.0
  %948 = vmatprep.subr.mxu0 0.0
  %949 = vmatpush1.msra.mxu0 0.0
  %950 = vmatprep.subr.mxu0 0.0
  %951 = vmatpush1.msra.mxu0 0.0
  %952 = vmatprep.subr.mxu0 0.0
  %953 = vmatpush1.msra.mxu0 0.0
  %954 = vmatprep.subr.mxu0 0.0
  %955 = vmatpush1.msra.mxu0 0.0
  %956 = vmatprep.subr.mxu0 0.0
  %957 = vmatpush1.msra.mxu0 0.0
  %958 = vmatprep.subr.mxu0 0.0
  %959 = vmatpush1.msra.mxu0 0.0
  %960 = vmatprep.subr.mxu0 0.0
  %961 = vmatpush1.msra.mxu0 0.0
  %962 = vmatprep.subr.mxu0 0.0
  %963 = vmatpush1.msra.mxu0 0.0
  %964 = vmatprep.subr.mxu0 0.0
  %965 = vmatpush1.msra.mxu0 0.0
  %966 = vmatprep.subr.mxu0 0.0
  %967 = vmatpush1.msra.mxu0 0.0
  %968 = vmatprep.subr.mxu0 0.0
  %969 = vmatpush1.msra.mxu0 0.0
  %970 = vmatprep.subr.mxu0 0.0
  %971 = vmatpush1.msra.mxu0 0.0
  %972 = vmatprep.subr.mxu0 0.0
  %973 = vmatpush1.msra.mxu0 0.0
  %974 = vmatprep.subr.mxu0 0.0
  %975 = vmatpush1.msra.mxu0 0.0
  %976 = vmatprep.subr.mxu0 0.0
  %977 = vmatpush1.msra.mxu0 0.0
  %978 = vmatprep.subr.mxu0 0.0
  %979 = vmatpush1.msra.mxu0 0.0
  %980 = vmatprep.subr.mxu0 0.0
  %981 = vmatpush1.msra.mxu0 0.0
  %982 = vmatprep.subr.mxu0 0.0
  %983 = vmatpush1.msra.mxu0 0.0
  %984 = vmatprep.subr.mxu0 0.0
  %985 = vmatpush1.msra.mxu0 0.0
  %986 = vmatprep.subr.mxu0 0.0
  %987 = vmatpush1.msra.mxu0 0.0
  %988 = vmatprep.subr.mxu0 0.0
  %989 = vmatpush1.msra.mxu0 0.0
  %990 = vmatprep.subr.mxu0 0.0
  %991 = vmatpush1.msra.mxu0 0.0
  %992 = vmatprep.subr.mxu0 0.0
  %993 = vmatpush1.msra.mxu0 0.0
  %994 = vmatprep.mubr.f32.mxu0 0.0
  %995 = vmatmul.mubr.f32.gmra.mrb[0].mxu0 %v928
  %v996 = vpop.f32.mrb[0].mxu0
  %v997 = vadd.f32 %v825, %v996
  %v998 = vpop.f32.mrb[0].mxu0
  %999 = vdwg.mxu0
  %v1000 = vadd.f32 %v997, %v209
  %v1001 = vxor.u32 %v1000, 2147483648
  %v1002 = vmul.f32 %v1001, 1.442695
  %v1003 = vpow.pop %v1002
  %v1004 = vadd.f32 %v1003, 1.0
  %v1005 = vrcp.pop %v1004
  %v1006 = vmul.f32 1.0, %v1005
  %v1007 = vtanh.pop %v1000
  %v1008 = vmul.f32 %v1006, %v746
  %1010 = vrot.lane.b32.xlu0 %v1007, 32
  %v1011 = vpop.permute.xlu0 %1010
  %v1013 = vmul.f32 %v1006, %v1011
  %1015 = vrot.lane.b32.xlu0 %v1013, 32
  %v1016 = vpop.permute.xlu0 %1015
  %v1018 = vadd.f32 %v1008, %v1016
  %v1019 = vtanh.pop %v1018
  %1021 = vrot.lane.b32.xlu0 %v1019, 32
  %v1022 = vpop.permute.xlu0 %1021
  %v1024 = vmul.f32 %v1006, %v1022
  %1026 = vrot.lane.b32.xlu0 %v1024, 64
  %v1027 = vpop.permute.xlu0 %1026
  %v1028 = vsel %vm211, %v1027, 0
  %1030 = vmatprep.subr.mxu0 0.0
  %1031 = vmatpush1.msra.mxu0 %v200
  %1032 = vmatprep.subr.mxu0 0.0
  %1033 = vmatpush1.msra.mxu0 %v201
  %1034 = vmatprep.subr.mxu0 0.0
  %1035 = vmatpush1.msra.mxu0 %v202
  %1036 = vmatprep.subr.mxu0 0.0
  %1037 = vmatpush1.msra.mxu0 %v203
  %1038 = vmatprep.subr.mxu0 0.0
  %1039 = vmatpush1.msra.mxu0 0.0
  %1040 = vmatprep.subr.mxu0 0.0
  %1041 = vmatpush1.msra.mxu0 0.0
  %1042 = vmatprep.subr.mxu0 0.0
  %1043 = vmatpush1.msra.mxu0 0.0
  %1044 = vmatprep.subr.mxu0 0.0
  %1045 = vmatpush1.msra.mxu0 0.0
  %1046 = vmatprep.subr.mxu0 0.0
  %1047 = vmatpush1.msra.mxu0 0.0
  %1048 = vmatprep.subr.mxu0 0.0
  %1049 = vmatpush1.msra.mxu0 0.0
  %1050 = vmatprep.subr.mxu0 0.0
  %1051 = vmatpush1.msra.mxu0 0.0
  %1052 = vmatprep.subr.mxu0 0.0
  %1053 = vmatpush1.msra.mxu0 0.0
  %1054 = vmatprep.subr.mxu0 0.0
  %1055 = vmatpush1.msra.mxu0 0.0
  %1056 = vmatprep.subr.mxu0 0.0
  %1057 = vmatpush1.msra.mxu0 0.0
  %1058 = vmatprep.subr.mxu0 0.0
  %1059 = vmatpush1.msra.mxu0 0.0
  %1060 = vmatprep.subr.mxu0 0.0
  %1061 = vmatpush1.msra.mxu0 0.0
  %1062 = vmatprep.subr.mxu0 0.0
  %1063 = vmatpush1.msra.mxu0 0.0
  %1064 = vmatprep.subr.mxu0 0.0
  %1065 = vmatpush1.msra.mxu0 0.0
  %1066 = vmatprep.subr.mxu0 0.0
  %1067 = vmatpush1.msra.mxu0 0.0
  %1068 = vmatprep.subr.mxu0 0.0
  %1069 = vmatpush1.msra.mxu0 0.0
  %1070 = vmatprep.subr.mxu0 0.0
  %1071 = vmatpush1.msra.mxu0 0.0
  %1072 = vmatprep.subr.mxu0 0.0
  %1073 = vmatpush1.msra.mxu0 0.0
  %1074 = vmatprep.subr.mxu0 0.0
  %1075 = vmatpush1.msra.mxu0 0.0
  %1076 = vmatprep.subr.mxu0 0.0
  %1077 = vmatpush1.msra.mxu0 0.0
  %1078 = vmatprep.subr.mxu0 0.0
  %1079 = vmatpush1.msra.mxu0 0.0
  %1080 = vmatprep.subr.mxu0 0.0
  %1081 = vmatpush1.msra.mxu0 0.0
  %1082 = vmatprep.subr.mxu0 0.0
  %1083 = vmatpush1.msra.mxu0 0.0
  %1084 = vmatprep.subr.mxu0 0.0
  %1085 = vmatpush1.msra.mxu0 0.0
  %1086 = vmatprep.subr.mxu0 0.0
  %1087 = vmatpush1.msra.mxu0 0.0
  %1088 = vmatprep.subr.mxu0 0.0
  %1089 = vmatpush1.msra.mxu0 0.0
  %1090 = vmatprep.subr.mxu0 0.0
  %1091 = vmatpush1.msra.mxu0 0.0
  %1092 = vmatprep.subr.mxu0 0.0
  %1093 = vmatpush1.msra.mxu0 0.0
  %1094 = vmatprep.mubr.f32.mxu0 0.0
  %1095 = vmatmul.mubr.f32.gmra.mrb[0].mxu0 %v1028
  %v1096 = vpop.f32.mrb[0].mxu0
  %v1097 = vadd.f32 0.0, %v1096
  %v1098 = vpop.f32.mrb[0].mxu0
  %1099 = vdwg.mxu0
  %s1100 = scalar_lea.vmem [#allocation2], 24
  %v1101 = vld [vmem:[%s1100] sm:$0xff]
  %1102 = vmatprep.subr.mxu0 0.0
  %1103 = vmatpush1.msra.mxu0 %v192
  %1104 = vmatprep.subr.mxu0 0.0
  %1105 = vmatpush1.msra.mxu0 %v193
  %1106 = vmatprep.subr.mxu0 0.0
  %1107 = vmatpush1.msra.mxu0 %v194
  %1108 = vmatprep.subr.mxu0 0.0
  %1109 = vmatpush1.msra.mxu0 %v195
  %1110 = vmatprep.subr.mxu0 0.0
  %1111 = vmatpush1.msra.mxu0 0.0
  %1112 = vmatprep.subr.mxu0 0.0
  %1113 = vmatpush1.msra.mxu0 0.0
  %1114 = vmatprep.subr.mxu0 0.0
  %1115 = vmatpush1.msra.mxu0 0.0
  %1116 = vmatprep.subr.mxu0 0.0
  %1117 = vmatpush1.msra.mxu0 0.0
  %1118 = vmatprep.subr.mxu0 0.0
  %1119 = vmatpush1.msra.mxu0 0.0
  %1120 = vmatprep.subr.mxu0 0.0
  %1121 = vmatpush1.msra.mxu0 0.0
  %1122 = vmatprep.subr.mxu0 0.0
  %1123 = vmatpush1.msra.mxu0 0.0
  %1124 = vmatprep.subr.mxu0 0.0
  %1125 = vmatpush1.msra.mxu0 0.0
  %1126 = vmatprep.subr.mxu0 0.0
  %1127 = vmatpush1.msra.mxu0 0.0
  %1128 = vmatprep.subr.mxu0 0.0
  %1129 = vmatpush1.msra.mxu0 0.0
  %1130 = vmatprep.subr.mxu0 0.0
  %1131 = vmatpush1.msra.mxu0 0.0
  %1132 = vmatprep.subr.mxu0 0.0
  %1133 = vmatpush1.msra.mxu0 0.0
  %1134 = vmatprep.subr.mxu0 0.0
  %1135 = vmatpush1.msra.mxu0 0.0
  %1136 = vmatprep.subr.mxu0 0.0
  %1137 = vmatpush1.msra.mxu0 0.0
  %1138 = vmatprep.subr.mxu0 0.0
  %1139 = vmatpush1.msra.mxu0 0.0
  %1140 = vmatprep.subr.mxu0 0.0
  %1141 = vmatpush1.msra.mxu0 0.0
  %1142 = vmatprep.subr.mxu0 0.0
  %1143 = vmatpush1.msra.mxu0 0.0
  %1144 = vmatprep.subr.mxu0 0.0
  %1145 = vmatpush1.msra.mxu0 0.0
  %1146 = vmatprep.subr.mxu0 0.0
  %1147 = vmatpush1.msra.mxu0 0.0
  %1148 = vmatprep.subr.mxu0 0.0
  %1149 = vmatpush1.msra.mxu0 0.0
  %1150 = vmatprep.subr.mxu0 0.0
  %1151 = vmatpush1.msra.mxu0 0.0
  %1152 = vmatprep.subr.mxu0 0.0
  %1153 = vmatpush1.msra.mxu0 0.0
  %1154 = vmatprep.subr.mxu0 0.0
  %1155 = vmatpush1.msra.mxu0 0.0
  %1156 = vmatprep.subr.mxu0 0.0
  %1157 = vmatpush1.msra.mxu0 0.0
  %1158 = vmatprep.subr.mxu0 0.0
  %1159 = vmatpush1.msra.mxu0 0.0
  %1160 = vmatprep.subr.mxu0 0.0
  %1161 = vmatpush1.msra.mxu0 0.0
  %1162 = vmatprep.subr.mxu0 0.0
  %1163 = vmatpush1.msra.mxu0 0.0
  %1164 = vmatprep.subr.mxu0 0.0
  %1165 = vmatpush1.msra.mxu0 0.0
  %1166 = vmatprep.mubr.f32.mxu0 0.0
  %1167 = vmatmul.mubr.f32.gmra.mrb[0].mxu0 %v928
  %v1168 = vpop.f32.mrb[0].mxu0
  %v1169 = vadd.f32 0.0, %v1168
  %v1170 = vpop.f32.mrb[0].mxu0
  %1171 = vdwg.mxu0
  %v1172 = vadd.f32 %v1101, %v1169
  %v1173 = vxor.u32 %v1172, 2147483648
  %v1174 = vmul.f32 %v1173, 1.442695
  %v1175 = vpow.pop %v1174
  %v1176 = vadd.f32 %v1175, 1.0
  %v1177 = vrcp.pop %v1176
  %v1178 = vmul.f32 1.0, %v1177
  %v1179 = vtanh.pop %v1172
  %v1180 = vmul.f32 %v1178, %v918
  %1182 = vrot.lane.b32.xlu0 %v1179, 32
  %v1183 = vpop.permute.xlu0 %1182
  %v1185 = vmul.f32 %v1178, %v1183
  %1187 = vrot.lane.b32.xlu0 %v1185, 32
  %v1188 = vpop.permute.xlu0 %1187
  %v1190 = vadd.f32 %v1180, %v1188
  %v1191 = vtanh.pop %v1190
  %1193 = vrot.lane.b32.xlu0 %v1191, 32
  %v1194 = vpop.permute.xlu0 %1193
  %v1196 = vmul.f32 %v1178, %v1194
  %1198 = vrot.lane.b32.xlu0 %v1196, 64
  %v1199 = vpop.permute.xlu0 %1198
  %v1200 = vsel %vm211, %v1199, 0
  %1202 = vmatprep.subr.mxu0 0.0
  %1203 = vmatpush1.msra.mxu0 %v196
  %1204 = vmatprep.subr.mxu0 0.0
  %1205 = vmatpush1.msra.mxu0 %v197
  %1206 = vmatprep.subr.mxu0 0.0
  %1207 = vmatpush1.msra.mxu0 %v198
  %1208 = vmatprep.subr.mxu0 0.0
  %1209 = vmatpush1.msra.mxu0 %v199
  %1210 = vmatprep.subr.mxu0 0.0
  %1211 = vmatpush1.msra.mxu0 0.0
  %1212 = vmatprep.subr.mxu0 0.0
  %1213 = vmatpush1.msra.mxu0 0.0
  %1214 = vmatprep.subr.mxu0 0.0
  %1215 = vmatpush1.msra.mxu0 0.0
  %1216 = vmatprep.subr.mxu0 0.0
  %1217 = vmatpush1.msra.mxu0 0.0
  %1218 = vmatprep.subr.mxu0 0.0
  %1219 = vmatpush1.msra.mxu0 0.0
  %1220 = vmatprep.subr.mxu0 0.0
  %1221 = vmatpush1.msra.mxu0 0.0
  %1222 = vmatprep.subr.mxu0 0.0
  %1223 = vmatpush1.msra.mxu0 0.0
  %1224 = vmatprep.subr.mxu0 0.0
  %1225 = vmatpush1.msra.mxu0 0.0
  %1226 = vmatprep.subr.mxu0 0.0
  %1227 = vmatpush1.msra.mxu0 0.0
  %1228 = vmatprep.subr.mxu0 0.0
  %1229 = vmatpush1.msra.mxu0 0.0
  %1230 = vmatprep.subr.mxu0 0.0
  %1231 = vmatpush1.msra.mxu0 0.0
  %1232 = vmatprep.subr.mxu0 0.0
  %1233 = vmatpush1.msra.mxu0 0.0
  %1234 = vmatprep.subr.mxu0 0.0
  %1235 = vmatpush1.msra.mxu0 0.0
  %1236 = vmatprep.subr.mxu0 0.0
  %1237 = vmatpush1.msra.mxu0 0.0
  %1238 = vmatprep.subr.mxu0 0.0
  %1239 = vmatpush1.msra.mxu0 0.0
  %1240 = vmatprep.subr.mxu0 0.0
  %1241 = vmatpush1.msra.mxu0 0.0
  %1242 = vmatprep.subr.mxu0 0.0
  %1243 = vmatpush1.msra.mxu0 0.0
  %1244 = vmatprep.subr.mxu0 0.0
  %1245 = vmatpush1.msra.mxu0 0.0
  %1246 = vmatprep.subr.mxu0 0.0
  %1247 = vmatpush1.msra.mxu0 0.0
  %1248 = vmatprep.subr.mxu0 0.0
  %1249 = vmatpush1.msra.mxu0 0.0
  %1250 = vmatprep.subr.mxu0 0.0
  %1251 = vmatpush1.msra.mxu0 0.0
  %1252 = vmatprep.subr.mxu0 0.0
  %1253 = vmatpush1.msra.mxu0 0.0
  %1254 = vmatprep.subr.mxu0 0.0
  %1255 = vmatpush1.msra.mxu0 0.0
  %1256 = vmatprep.subr.mxu0 0.0
  %1257 = vmatpush1.msra.mxu0 0.0
  %1258 = vmatprep.subr.mxu0 0.0
  %1259 = vmatpush1.msra.mxu0 0.0
  %1260 = vmatprep.subr.mxu0 0.0
  %1261 = vmatpush1.msra.mxu0 0.0
  %1262 = vmatprep.subr.mxu0 0.0
  %1263 = vmatpush1.msra.mxu0 0.0
  %1264 = vmatprep.subr.mxu0 0.0
  %1265 = vmatpush1.msra.mxu0 0.0
  %1266 = vmatprep.mubr.f32.mxu0 0.0
  %1267 = vmatmul.mubr.f32.gmra.mrb[0].mxu0 %v1200
  %v1268 = vpop.f32.mrb[0].mxu0
  %v1269 = vadd.f32 %v1097, %v1268
  %v1270 = vpop.f32.mrb[0].mxu0
  %1271 = vdwg.mxu0
  %v1272 = vadd.f32 %v1269, %v209
  %v1273 = vxor.u32 %v1272, 2147483648
  %v1274 = vmul.f32 %v1273, 1.442695
  %v1275 = vpow.pop %v1274
  %v1276 = vadd.f32 %v1275, 1.0
  %v1277 = vrcp.pop %v1276
  %v1278 = vmul.f32 1.0, %v1277
  %v1279 = vtanh.pop %v1272
  %v1280 = vmul.f32 %v1278, %v1018
  %1282 = vrot.lane.b32.xlu0 %v1279, 32
  %v1283 = vpop.permute.xlu0 %1282
  %v1285 = vmul.f32 %v1278, %v1283
  %1287 = vrot.lane.b32.xlu0 %v1285, 32
  %v1288 = vpop.permute.xlu0 %1287
  %v1290 = vadd.f32 %v1280, %v1288
  %v1291 = vtanh.pop %v1290
  %1293 = vrot.lane.b32.xlu0 %v1291, 32
  %v1294 = vpop.permute.xlu0 %1293
  %v1296 = vmul.f32 %v1278, %v1294
  %1298 = vrot.lane.b32.xlu0 %v1296, 64
  %v1299 = vpop.permute.xlu0 %1298
  %v1300 = vsel %vm211, %v1299, 0
  %1302 = vmatprep.subr.mxu0 0.0
  %1303 = vmatpush1.msra.mxu0 %v200
  %1304 = vmatprep.subr.mxu0 0.0
  %1305 = vmatpush1.msra.mxu0 %v201
  %1306 = vmatprep.subr.mxu0 0.0
  %1307 = vmatpush1.msra.mxu0 %v202
  %1308 = vmatprep.subr.mxu0 0.0
  %1309 = vmatpush1.msra.mxu0 %v203
  %1310 = vmatprep.subr.mxu0 0.0
  %1311 = vmatpush1.msra.mxu0 0.0
  %1312 = vmatprep.subr.mxu0 0.0
  %1313 = vmatpush1.msra.mxu0 0.0
  %1314 = vmatprep.subr.mxu0 0.0
  %1315 = vmatpush1.msra.mxu0 0.0
  %1316 = vmatprep.subr.mxu0 0.0
  %1317 = vmatpush1.msra.mxu0 0.0
  %1318 = vmatprep.subr.mxu0 0.0
  %1319 = vmatpush1.msra.mxu0 0.0
  %1320 = vmatprep.subr.mxu0 0.0
  %1321 = vmatpush1.msra.mxu0 0.0
  %1322 = vmatprep.subr.mxu0 0.0
  %1323 = vmatpush1.msra.mxu0 0.0
  %1324 = vmatprep.subr.mxu0 0.0
  %1325 = vmatpush1.msra.mxu0 0.0
  %1326 = vmatprep.subr.mxu0 0.0
  %1327 = vmatpush1.msra.mxu0 0.0
  %1328 = vmatprep.subr.mxu0 0.0
  %1329 = vmatpush1.msra.mxu0 0.0
  %1330 = vmatprep.subr.mxu0 0.0
  %1331 = vmatpush1.msra.mxu0 0.0
  %1332 = vmatprep.subr.mxu0 0.0
  %1333 = vmatpush1.msra.mxu0 0.0
  %1334 = vmatprep.subr.mxu0 0.0
  %1335 = vmatpush1.msra.mxu0 0.0
  %1336 = vmatprep.subr.mxu0 0.0
  %1337 = vmatpush1.msra.mxu0 0.0
  %1338 = vmatprep.subr.mxu0 0.0
  %1339 = vmatpush1.msra.mxu0 0.0
  %1340 = vmatprep.subr.mxu0 0.0
  %1341 = vmatpush1.msra.mxu0 0.0
  %1342 = vmatprep.subr.mxu0 0.0
  %1343 = vmatpush1.msra.mxu0 0.0
  %1344 = vmatprep.subr.mxu0 0.0
  %1345 = vmatpush1.msra.mxu0 0.0
  %1346 = vmatprep.subr.mxu0 0.0
  %1347 = vmatpush1.msra.mxu0 0.0
  %1348 = vmatprep.subr.mxu0 0.0
  %1349 = vmatpush1.msra.mxu0 0.0
  %1350 = vmatprep.subr.mxu0 0.0
  %1351 = vmatpush1.msra.mxu0 0.0
  %1352 = vmatprep.subr.mxu0 0.0
  %1353 = vmatpush1.msra.mxu0 0.0
  %1354 = vmatprep.subr.mxu0 0.0
  %1355 = vmatpush1.msra.mxu0 0.0
  %1356 = vmatprep.subr.mxu0 0.0
  %1357 = vmatpush1.msra.mxu0 0.0
  %1358 = vmatprep.subr.mxu0 0.0
  %1359 = vmatpush1.msra.mxu0 0.0
  %1360 = vmatprep.subr.mxu0 0.0
  %1361 = vmatpush1.msra.mxu0 0.0
  %1362 = vmatprep.subr.mxu0 0.0
  %1363 = vmatpush1.msra.mxu0 0.0
  %1364 = vmatprep.subr.mxu0 0.0
  %1365 = vmatpush1.msra.mxu0 0.0
  %1366 = vmatprep.mubr.f32.mxu0 0.0
  %1367 = vmatmul.mubr.f32.gmra.mrb[0].mxu0 %v1300
  %v1368 = vpop.f32.mrb[0].mxu0
  %v1369 = vadd.f32 0.0, %v1368
  %v1370 = vpop.f32.mrb[0].mxu0
  %1371 = vdwg.mxu0
  %s1372 = scalar_lea.vmem [#allocation2], 32
  %v1373 = vld [vmem:[%s1372] sm:$0xff]
  %1374 = vmatprep.subr.mxu0 0.0
  %1375 = vmatpush1.msra.mxu0 %v192
  %1376 = vmatprep.subr.mxu0 0.0
  %1377 = vmatpush1.msra.mxu0 %v193
  %1378 = vmatprep.subr.mxu0 0.0
  %1379 = vmatpush1.msra.mxu0 %v194
  %1380 = vmatprep.subr.mxu0 0.0
  %1381 = vmatpush1.msra.mxu0 %v195
  %1382 = vmatprep.subr.mxu0 0.0
  %1383 = vmatpush1.msra.mxu0 0.0
  %1384 = vmatprep.subr.mxu0 0.0
  %1385 = vmatpush1.msra.mxu0 0.0
  %1386 = vmatprep.subr.mxu0 0.0
  %1387 = vmatpush1.msra.mxu0 0.0
  %1388 = vmatprep.subr.mxu0 0.0
  %1389 = vmatpush1.msra.mxu0 0.0
  %1390 = vmatprep.subr.mxu0 0.0
  %1391 = vmatpush1.msra.mxu0 0.0
  %1392 = vmatprep.subr.mxu0 0.0
  %1393 = vmatpush1.msra.mxu0 0.0
  %1394 = vmatprep.subr.mxu0 0.0
  %1395 = vmatpush1.msra.mxu0 0.0
  %1396 = vmatprep.subr.mxu0 0.0
  %1397 = vmatpush1.msra.mxu0 0.0
  %1398 = vmatprep.subr.mxu0 0.0
  %1399 = vmatpush1.msra.mxu0 0.0
  %1400 = vmatprep.subr.mxu0 0.0
  %1401 = vmatpush1.msra.mxu0 0.0
  %1402 = vmatprep.subr.mxu0 0.0
  %1403 = vmatpush1.msra.mxu0 0.0
  %1404 = vmatprep.subr.mxu0 0.0
  %1405 = vmatpush1.msra.mxu0 0.0
  %1406 = vmatprep.subr.mxu0 0.0
  %1407 = vmatpush1.msra.mxu0 0.0
  %1408 = vmatprep.subr.mxu0 0.0
  %1409 = vmatpush1.msra.mxu0 0.0
  %1410 = vmatprep.subr.mxu0 0.0
  %1411 = vmatpush1.msra.mxu0 0.0
  %1412 = vmatprep.subr.mxu0 0.0
  %1413 = vmatpush1.msra.mxu0 0.0
  %1414 = vmatprep.subr.mxu0 0.0
  %1415 = vmatpush1.msra.mxu0 0.0
  %1416 = vmatprep.subr.mxu0 0.0
  %1417 = vmatpush1.msra.mxu0 0.0
  %1418 = vmatprep.subr.mxu0 0.0
  %1419 = vmatpush1.msra.mxu0 0.0
  %1420 = vmatprep.subr.mxu0 0.0
  %1421 = vmatpush1.msra.mxu0 0.0
  %1422 = vmatprep.subr.mxu0 0.0
  %1423 = vmatpush1.msra.mxu0 0.0
  %1424 = vmatprep.subr.mxu0 0.0
  %1425 = vmatpush1.msra.mxu0 0.0
  %1426 = vmatprep.subr.mxu0 0.0
  %1427 = vmatpush1.msra.mxu0 0.0
  %1428 = vmatprep.subr.mxu0 0.0
  %1429 = vmatpush1.msra.mxu0 0.0
  %1430 = vmatprep.subr.mxu0 0.0
  %1431 = vmatpush1.msra.mxu0 0.0
  %1432 = vmatprep.subr.mxu0 0.0
  %1433 = vmatpush1.msra.mxu0 0.0
  %1434 = vmatprep.subr.mxu0 0.0
  %1435 = vmatpush1.msra.mxu0 0.0
  %1436 = vmatprep.subr.mxu0 0.0
  %1437 = vmatpush1.msra.mxu0 0.0
  %1438 = vmatprep.mubr.f32.mxu0 0.0
  %1439 = vmatmul.mubr.f32.gmra.mrb[0].mxu0 %v1200
  %v1440 = vpop.f32.mrb[0].mxu0
  %v1441 = vadd.f32 0.0, %v1440
  %v1442 = vpop.f32.mrb[0].mxu0
  %1443 = vdwg.mxu0
  %v1444 = vadd.f32 %v1373, %v1441
  %v1445 = vxor.u32 %v1444, 2147483648
  %v1446 = vmul.f32 %v1445, 1.442695
  %v1447 = vpow.pop %v1446
  %v1448 = vadd.f32 %v1447, 1.0
  %v1449 = vrcp.pop %v1448
  %v1450 = vmul.f32 1.0, %v1449
  %v1451 = vtanh.pop %v1444
  %v1452 = vmul.f32 %v1450, %v1190
  %1454 = vrot.lane.b32.xlu0 %v1451, 32
  %v1455 = vpop.permute.xlu0 %1454
  %v1457 = vmul.f32 %v1450, %v1455
  %1459 = vrot.lane.b32.xlu0 %v1457, 32
  %v1460 = vpop.permute.xlu0 %1459
  %v1462 = vadd.f32 %v1452, %v1460
  %v1463 = vtanh.pop %v1462
  %1465 = vrot.lane.b32.xlu0 %v1463, 32
  %v1466 = vpop.permute.xlu0 %1465
  %v1468 = vmul.f32 %v1450, %v1466
  %1470 = vrot.lane.b32.xlu0 %v1468, 64
  %v1471 = vpop.permute.xlu0 %1470
  %v1472 = vsel %vm211, %v1471, 0
  %1474 = vmatprep.subr.mxu0 0.0
  %1475 = vmatpush1.msra.mxu0 %v196
  %1476 = vmatprep.subr.mxu0 0.0
  %1477 = vmatpush1.msra.mxu0 %v197
  %1478 = vmatprep.subr.mxu0 0.0
  %1479 = vmatpush1.msra.mxu0 %v198
  %1480 = vmatprep.subr.mxu0 0.0
  %1481 = vmatpush1.msra.mxu0 %v199
  %1482 = vmatprep.subr.mxu0 0.0
  %1483 = vmatpush1.msra.mxu0 0.0
  %1484 = vmatprep.subr.mxu0 0.0
  %1485 = vmatpush1.msra.mxu0 0.0
  %1486 = vmatprep.subr.mxu0 0.0
  %1487 = vmatpush1.msra.mxu0 0.0
  %1488 = vmatprep.subr.mxu0 0.0
  %1489 = vmatpush1.msra.mxu0 0.0
  %1490 = vmatprep.subr.mxu0 0.0
  %1491 = vmatpush1.msra.mxu0 0.0
  %1492 = vmatprep.subr.mxu0 0.0
  %1493 = vmatpush1.msra.mxu0 0.0
  %1494 = vmatprep.subr.mxu0 0.0
  %1495 = vmatpush1.msra.mxu0 0.0
  %1496 = vmatprep.subr.mxu0 0.0
  %1497 = vmatpush1.msra.mxu0 0.0
  %1498 = vmatprep.subr.mxu0 0.0
  %1499 = vmatpush1.msra.mxu0 0.0
  %1500 = vmatprep.subr.mxu0 0.0
  %1501 = vmatpush1.msra.mxu0 0.0
  %1502 = vmatprep.subr.mxu0 0.0
  %1503 = vmatpush1.msra.mxu0 0.0
  %1504 = vmatprep.subr.mxu0 0.0
  %1505 = vmatpush1.msra.mxu0 0.0
  %1506 = vmatprep.subr.mxu0 0.0
  %1507 = vmatpush1.msra.mxu0 0.0
  %1508 = vmatprep.subr.mxu0 0.0
  %1509 = vmatpush1.msra.mxu0 0.0
  %1510 = vmatprep.subr.mxu0 0.0
  %1511 = vmatpush1.msra.mxu0 0.0
  %1512 = vmatprep.subr.mxu0 0.0
  %1513 = vmatpush1.msra.mxu0 0.0
  %1514 = vmatprep.subr.mxu0 0.0
  %1515 = vmatpush1.msra.mxu0 0.0
  %1516 = vmatprep.subr.mxu0 0.0
  %1517 = vmatpush1.msra.mxu0 0.0
  %1518 = vmatprep.subr.mxu0 0.0
  %1519 = vmatpush1.msra.mxu0 0.0
  %1520 = vmatprep.subr.mxu0 0.0
  %1521 = vmatpush1.msra.mxu0 0.0
  %1522 = vmatprep.subr.mxu0 0.0
  %1523 = vmatpush1.msra.mxu0 0.0
  %1524 = vmatprep.subr.mxu0 0.0
  %1525 = vmatpush1.msra.mxu0 0.0
  %1526 = vmatprep.subr.mxu0 0.0
  %1527 = vmatpush1.msra.mxu0 0.0
  %1528 = vmatprep.subr.mxu0 0.0
  %1529 = vmatpush1.msra.mxu0 0.0
  %1530 = vmatprep.subr.mxu0 0.0
  %1531 = vmatpush1.msra.mxu0 0.0
  %1532 = vmatprep.subr.mxu0 0.0
  %1533 = vmatpush1.msra.mxu0 0.0
  %1534 = vmatprep.subr.mxu0 0.0
  %1535 = vmatpush1.msra.mxu0 0.0
  %1536 = vmatprep.subr.mxu0 0.0
  %1537 = vmatpush1.msra.mxu0 0.0
  %1538 = vmatprep.mubr.f32.mxu0 0.0
  %1539 = vmatmul.mubr.f32.gmra.mrb[0].mxu0 %v1472
  %v1540 = vpop.f32.mrb[0].mxu0
  %v1541 = vadd.f32 %v1369, %v1540
  %v1542 = vpop.f32.mrb[0].mxu0
  %1543 = vdwg.mxu0
  %v1544 = vadd.f32 %v1541, %v209
  %v1545 = vxor.u32 %v1544, 2147483648
  %v1546 = vmul.f32 %v1545, 1.442695
  %v1547 = vpow.pop %v1546
  %v1548 = vadd.f32 %v1547, 1.0
  %v1549 = vrcp.pop %v1548
  %v1550 = vmul.f32 1.0, %v1549
  %v1551 = vtanh.pop %v1544
  %v1552 = vmul.f32 %v1550, %v1290
  %1554 = vrot.lane.b32.xlu0 %v1551, 32
  %v1555 = vpop.permute.xlu0 %1554
  %v1557 = vmul.f32 %v1550, %v1555
  %1559 = vrot.lane.b32.xlu0 %v1557, 32
  %v1560 = vpop.permute.xlu0 %1559
  %v1562 = vadd.f32 %v1552, %v1560
  %v1563 = vtanh.pop %v1562
  %1565 = vrot.lane.b32.xlu0 %v1563, 32
  %v1566 = vpop.permute.xlu0 %1565
  %v1568 = vmul.f32 %v1550, %v1566
  %1570 = vrot.lane.b32.xlu0 %v1568, 64
  %v1571 = vpop.permute.xlu0 %1570
  %v1572 = vsel %vm211, %v1571, 0
  %1574 = vmatprep.subr.mxu0 0.0
  %1575 = vmatpush1.msra.mxu0 %v200
  %1576 = vmatprep.subr.mxu0 0.0
  %1577 = vmatpush1.msra.mxu0 %v201
  %1578 = vmatprep.subr.mxu0 0.0
  %1579 = vmatpush1.msra.mxu0 %v202
  %1580 = vmatprep.subr.mxu0 0.0
  %1581 = vmatpush1.msra.mxu0 %v203
  %1582 = vmatprep.subr.mxu0 0.0
  %1583 = vmatpush1.msra.mxu0 0.0
  %1584 = vmatprep.subr.mxu0 0.0
  %1585 = vmatpush1.msra.mxu0 0.0
  %1586 = vmatprep.subr.mxu0 0.0
  %1587 = vmatpush1.msra.mxu0 0.0
  %1588 = vmatprep.subr.mxu0 0.0
  %1589 = vmatpush1.msra.mxu0 0.0
  %1590 = vmatprep.subr.mxu0 0.0
  %1591 = vmatpush1.msra.mxu0 0.0
  %1592 = vmatprep.subr.mxu0 0.0
  %1593 = vmatpush1.msra.mxu0 0.0
  %1594 = vmatprep.subr.mxu0 0.0
  %1595 = vmatpush1.msra.mxu0 0.0
  %1596 = vmatprep.subr.mxu0 0.0
  %1597 = vmatpush1.msra.mxu0 0.0
  %1598 = vmatprep.subr.mxu0 0.0
  %1599 = vmatpush1.msra.mxu0 0.0
  %1600 = vmatprep.subr.mxu0 0.0
  %1601 = vmatpush1.msra.mxu0 0.0
  %1602 = vmatprep.subr.mxu0 0.0
  %1603 = vmatpush1.msra.mxu0 0.0
  %1604 = vmatprep.subr.mxu0 0.0
  %1605 = vmatpush1.msra.mxu0 0.0
  %1606 = vmatprep.subr.mxu0 0.0
  %1607 = vmatpush1.msra.mxu0 0.0
  %1608 = vmatprep.subr.mxu0 0.0
  %1609 = vmatpush1.msra.mxu0 0.0
  %1610 = vmatprep.subr.mxu0 0.0
  %1611 = vmatpush1.msra.mxu0 0.0
  %1612 = vmatprep.subr.mxu0 0.0
  %1613 = vmatpush1.msra.mxu0 0.0
  %1614 = vmatprep.subr.mxu0 0.0
  %1615 = vmatpush1.msra.mxu0 0.0
  %1616 = vmatprep.subr.mxu0 0.0
  %1617 = vmatpush1.msra.mxu0 0.0
  %1618 = vmatprep.subr.mxu0 0.0
  %1619 = vmatpush1.msra.mxu0 0.0
  %1620 = vmatprep.subr.mxu0 0.0
  %1621 = vmatpush1.msra.mxu0 0.0
  %1622 = vmatprep.subr.mxu0 0.0
  %1623 = vmatpush1.msra.mxu0 0.0
  %1624 = vmatprep.subr.mxu0 0.0
  %1625 = vmatpush1.msra.mxu0 0.0
  %1626 = vmatprep.subr.mxu0 0.0
  %1627 = vmatpush1.msra.mxu0 0.0
  %1628 = vmatprep.subr.mxu0 0.0
  %1629 = vmatpush1.msra.mxu0 0.0
  %1630 = vmatprep.subr.mxu0 0.0
  %1631 = vmatpush1.msra.mxu0 0.0
  %1632 = vmatprep.subr.mxu0 0.0
  %1633 = vmatpush1.msra.mxu0 0.0
  %1634 = vmatprep.subr.mxu0 0.0
  %1635 = vmatpush1.msra.mxu0 0.0
  %1636 = vmatprep.subr.mxu0 0.0
  %1637 = vmatpush1.msra.mxu0 0.0
  %1638 = vmatprep.mubr.f32.mxu0 0.0
  %1639 = vmatmul.mubr.f32.gmra.mrb[0].mxu0 %v1572
  %v1640 = vpop.f32.mrb[0].mxu0
  %v1641 = vadd.f32 0.0, %v1640
  %v1642 = vpop.f32.mrb[0].mxu0
  %1643 = vdwg.mxu0
  %s1644 = scalar_lea.vmem [#allocation2], 40
  %v1645 = vld [vmem:[%s1644] sm:$0xff]
  %1646 = vmatprep.subr.mxu0 0.0
  %1647 = vmatpush1.msra.mxu0 %v192
  %1648 = vmatprep.subr.mxu0 0.0
  %1649 = vmatpush1.msra.mxu0 %v193
  %1650 = vmatprep.subr.mxu0 0.0
  %1651 = vmatpush1.msra.mxu0 %v194
  %1652 = vmatprep.subr.mxu0 0.0
  %1653 = vmatpush1.msra.mxu0 %v195
  %1654 = vmatprep.subr.mxu0 0.0
  %1655 = vmatpush1.msra.mxu0 0.0
  %1656 = vmatprep.subr.mxu0 0.0
  %1657 = vmatpush1.msra.mxu0 0.0
  %1658 = vmatprep.subr.mxu0 0.0
  %1659 = vmatpush1.msra.mxu0 0.0
  %1660 = vmatprep.subr.mxu0 0.0
  %1661 = vmatpush1.msra.mxu0 0.0
  %1662 = vmatprep.subr.mxu0 0.0
  %1663 = vmatpush1.msra.mxu0 0.0
  %1664 = vmatprep.subr.mxu0 0.0
  %1665 = vmatpush1.msra.mxu0 0.0
  %1666 = vmatprep.subr.mxu0 0.0
  %1667 = vmatpush1.msra.mxu0 0.0
  %1668 = vmatprep.subr.mxu0 0.0
  %1669 = vmatpush1.msra.mxu0 0.0
  %1670 = vmatprep.subr.mxu0 0.0
  %1671 = vmatpush1.msra.mxu0 0.0
  %1672 = vmatprep.subr.mxu0 0.0
  %1673 = vmatpush1.msra.mxu0 0.0
  %1674 = vmatprep.subr.mxu0 0.0
  %1675 = vmatpush1.msra.mxu0 0.0
  %1676 = vmatprep.subr.mxu0 0.0
  %1677 = vmatpush1.msra.mxu0 0.0
  %1678 = vmatprep.subr.mxu0 0.0
  %1679 = vmatpush1.msra.mxu0 0.0
  %1680 = vmatprep.subr.mxu0 0.0
  %1681 = vmatpush1.msra.mxu0 0.0
  %1682 = vmatprep.subr.mxu0 0.0
  %1683 = vmatpush1.msra.mxu0 0.0
  %1684 = vmatprep.subr.mxu0 0.0
  %1685 = vmatpush1.msra.mxu0 0.0
  %1686 = vmatprep.subr.mxu0 0.0
  %1687 = vmatpush1.msra.mxu0 0.0
  %1688 = vmatprep.subr.mxu0 0.0
  %1689 = vmatpush1.msra.mxu0 0.0
  %1690 = vmatprep.subr.mxu0 0.0
  %1691 = vmatpush1.msra.mxu0 0.0
  %1692 = vmatprep.subr.mxu0 0.0
  %1693 = vmatpush1.msra.mxu0 0.0
  %1694 = vmatprep.subr.mxu0 0.0
  %1695 = vmatpush1.msra.mxu0 0.0
  %1696 = vmatprep.subr.mxu0 0.0
  %1697 = vmatpush1.msra.mxu0 0.0
  %1698 = vmatprep.subr.mxu0 0.0
  %1699 = vmatpush1.msra.mxu0 0.0
  %1700 = vmatprep.subr.mxu0 0.0
  %1701 = vmatpush1.msra.mxu0 0.0
  %1702 = vmatprep.subr.mxu0 0.0
  %1703 = vmatpush1.msra.mxu0 0.0
  %1704 = vmatprep.subr.mxu0 0.0
  %1705 = vmatpush1.msra.mxu0 0.0
  %1706 = vmatprep.subr.mxu0 0.0
  %1707 = vmatpush1.msra.mxu0 0.0
  %1708 = vmatprep.subr.mxu0 0.0
  %1709 = vmatpush1.msra.mxu0 0.0
  %1710 = vmatprep.mubr.f32.mxu0 0.0
  %1711 = vmatmul.mubr.f32.gmra.mrb[0].mxu0 %v1472
  %v1712 = vpop.f32.mrb[0].mxu0
  %v1713 = vadd.f32 0.0, %v1712
  %v1714 = vpop.f32.mrb[0].mxu0
  %1715 = vdwg.mxu0
  %v1716 = vadd.f32 %v1645, %v1713
  %v1717 = vxor.u32 %v1716, 2147483648
  %v1718 = vmul.f32 %v1717, 1.442695
  %v1719 = vpow.pop %v1718
  %v1720 = vadd.f32 %v1719, 1.0
  %v1721 = vrcp.pop %v1720
  %v1722 = vmul.f32 1.0, %v1721
  %v1723 = vtanh.pop %v1716
  %v1724 = vmul.f32 %v1722, %v1462
  %1726 = vrot.lane.b32.xlu0 %v1723, 32
  %v1727 = vpop.permute.xlu0 %1726
  %v1729 = vmul.f32 %v1722, %v1727
  %1731 = vrot.lane.b32.xlu0 %v1729, 32
  %v1732 = vpop.permute.xlu0 %1731
  %v1734 = vadd.f32 %v1724, %v1732
  %v1735 = vtanh.pop %v1734
  %1737 = vrot.lane.b32.xlu0 %v1735, 32
  %v1738 = vpop.permute.xlu0 %1737
  %v1740 = vmul.f32 %v1722, %v1738
  %1742 = vrot.lane.b32.xlu0 %v1740, 64
  %v1743 = vpop.permute.xlu0 %1742
  %v1744 = vsel %vm211, %v1743, 0
  %1746 = vmatprep.subr.mxu0 0.0
  %1747 = vmatpush1.msra.mxu0 %v196
  %1748 = vmatprep.subr.mxu0 0.0
  %1749 = vmatpush1.msra.mxu0 %v197
  %1750 = vmatprep.subr.mxu0 0.0
  %1751 = vmatpush1.msra.mxu0 %v198
  %1752 = vmatprep.subr.mxu0 0.0
  %1753 = vmatpush1.msra.mxu0 %v199
  %1754 = vmatprep.subr.mxu0 0.0
  %1755 = vmatpush1.msra.mxu0 0.0
  %1756 = vmatprep.subr.mxu0 0.0
  %1757 = vmatpush1.msra.mxu0 0.0
  %1758 = vmatprep.subr.mxu0 0.0
  %1759 = vmatpush1.msra.mxu0 0.0
  %1760 = vmatprep.subr.mxu0 0.0
  %1761 = vmatpush1.msra.mxu0 0.0
  %1762 = vmatprep.subr.mxu0 0.0
  %1763 = vmatpush1.msra.mxu0 0.0
  %1764 = vmatprep.subr.mxu0 0.0
  %1765 = vmatpush1.msra.mxu0 0.0
  %1766 = vmatprep.subr.mxu0 0.0
  %1767 = vmatpush1.msra.mxu0 0.0
  %1768 = vmatprep.subr.mxu0 0.0
  %1769 = vmatpush1.msra.mxu0 0.0
  %1770 = vmatprep.subr.mxu0 0.0
  %1771 = vmatpush1.msra.mxu0 0.0
  %1772 = vmatprep.subr.mxu0 0.0
  %1773 = vmatpush1.msra.mxu0 0.0
  %1774 = vmatprep.subr.mxu0 0.0
  %1775 = vmatpush1.msra.mxu0 0.0
  %1776 = vmatprep.subr.mxu0 0.0
  %1777 = vmatpush1.msra.mxu0 0.0
  %1778 = vmatprep.subr.mxu0 0.0
  %1779 = vmatpush1.msra.mxu0 0.0
  %1780 = vmatprep.subr.mxu0 0.0
  %1781 = vmatpush1.msra.mxu0 0.0
  %1782 = vmatprep.subr.mxu0 0.0
  %1783 = vmatpush1.msra.mxu0 0.0
  %1784 = vmatprep.subr.mxu0 0.0
  %1785 = vmatpush1.msra.mxu0 0.0
  %1786 = vmatprep.subr.mxu0 0.0
  %1787 = vmatpush1.msra.mxu0 0.0
  %1788 = vmatprep.subr.mxu0 0.0
  %1789 = vmatpush1.msra.mxu0 0.0
  %1790 = vmatprep.subr.mxu0 0.0
  %1791 = vmatpush1.msra.mxu0 0.0
  %1792 = vmatprep.subr.mxu0 0.0
  %1793 = vmatpush1.msra.mxu0 0.0
  %1794 = vmatprep.subr.mxu0 0.0
  %1795 = vmatpush1.msra.mxu0 0.0
  %1796 = vmatprep.subr.mxu0 0.0
  %1797 = vmatpush1.msra.mxu0 0.0
  %1798 = vmatprep.subr.mxu0 0.0
  %1799 = vmatpush1.msra.mxu0 0.0
  %1800 = vmatprep.subr.mxu0 0.0
  %1801 = vmatpush1.msra.mxu0 0.0
  %1802 = vmatprep.subr.mxu0 0.0
  %1803 = vmatpush1.msra.mxu0 0.0
  %1804 = vmatprep.subr.mxu0 0.0
  %1805 = vmatpush1.msra.mxu0 0.0
  %1806 = vmatprep.subr.mxu0 0.0
  %1807 = vmatpush1.msra.mxu0 0.0
  %1808 = vmatprep.subr.mxu0 0.0
  %1809 = vmatpush1.msra.mxu0 0.0
  %1810 = vmatprep.mubr.f32.mxu0 0.0
  %1811 = vmatmul.mubr.f32.gmra.mrb[0].mxu0 %v1744
  %v1812 = vpop.f32.mrb[0].mxu0
  %v1813 = vadd.f32 %v1641, %v1812
  %v1814 = vpop.f32.mrb[0].mxu0
  %1815 = vdwg.mxu0
  %v1816 = vadd.f32 %v1813, %v209
  %v1817 = vxor.u32 %v1816, 2147483648
  %v1818 = vmul.f32 %v1817, 1.442695
  %v1819 = vpow.pop %v1818
  %v1820 = vadd.f32 %v1819, 1.0
  %v1821 = vrcp.pop %v1820
  %v1822 = vmul.f32 1.0, %v1821
  %v1823 = vtanh.pop %v1816
  %v1824 = vmul.f32 %v1822, %v1562
  %1826 = vrot.lane.b32.xlu0 %v1823, 32
  %v1827 = vpop.permute.xlu0 %1826
  %v1829 = vmul.f32 %v1822, %v1827
  %1831 = vrot.lane.b32.xlu0 %v1829, 32
  %v1832 = vpop.permute.xlu0 %1831
  %v1834 = vadd.f32 %v1824, %v1832
  %v1835 = vtanh.pop %v1834
  %1837 = vrot.lane.b32.xlu0 %v1835, 32
  %v1838 = vpop.permute.xlu0 %1837
  %v1840 = vmul.f32 %v1822, %v1838
  %1842 = vrot.lane.b32.xlu0 %v1840, 64
  %v1843 = vpop.permute.xlu0 %1842
  %v1844 = vsel %vm211, %v1843, 0
  %1846 = vmatprep.subr.mxu0 0.0
  %1847 = vmatpush1.msra.mxu0 %v200
  %1848 = vmatprep.subr.mxu0 0.0
  %1849 = vmatpush1.msra.mxu0 %v201
  %1850 = vmatprep.subr.mxu0 0.0
  %1851 = vmatpush1.msra.mxu0 %v202
  %1852 = vmatprep.subr.mxu0 0.0
  %1853 = vmatpush1.msra.mxu0 %v203
  %1854 = vmatprep.subr.mxu0 0.0
  %1855 = vmatpush1.msra.mxu0 0.0
  %1856 = vmatprep.subr.mxu0 0.0
  %1857 = vmatpush1.msra.mxu0 0.0
  %1858 = vmatprep.subr.mxu0 0.0
  %1859 = vmatpush1.msra.mxu0 0.0
  %1860 = vmatprep.subr.mxu0 0.0
  %1861 = vmatpush1.msra.mxu0 0.0
  %1862 = vmatprep.subr.mxu0 0.0
  %1863 = vmatpush1.msra.mxu0 0.0
  %1864 = vmatprep.subr.mxu0 0.0
  %1865 = vmatpush1.msra.mxu0 0.0
  %1866 = vmatprep.subr.mxu0 0.0
  %1867 = vmatpush1.msra.mxu0 0.0
  %1868 = vmatprep.subr.mxu0 0.0
  %1869 = vmatpush1.msra.mxu0 0.0
  %1870 = vmatprep.subr.mxu0 0.0
  %1871 = vmatpush1.msra.mxu0 0.0
  %1872 = vmatprep.subr.mxu0 0.0
  %1873 = vmatpush1.msra.mxu0 0.0
  %1874 = vmatprep.subr.mxu0 0.0
  %1875 = vmatpush1.msra.mxu0 0.0
  %1876 = vmatprep.subr.mxu0 0.0
  %1877 = vmatpush1.msra.mxu0 0.0
  %1878 = vmatprep.subr.mxu0 0.0
  %1879 = vmatpush1.msra.mxu0 0.0
  %1880 = vmatprep.subr.mxu0 0.0
  %1881 = vmatpush1.msra.mxu0 0.0
  %1882 = vmatprep.subr.mxu0 0.0
  %1883 = vmatpush1.msra.mxu0 0.0
  %1884 = vmatprep.subr.mxu0 0.0
  %1885 = vmatpush1.msra.mxu0 0.0
  %1886 = vmatprep.subr.mxu0 0.0
  %1887 = vmatpush1.msra.mxu0 0.0
  %1888 = vmatprep.subr.mxu0 0.0
  %1889 = vmatpush1.msra.mxu0 0.0
  %1890 = vmatprep.subr.mxu0 0.0
  %1891 = vmatpush1.msra.mxu0 0.0
  %1892 = vmatprep.subr.mxu0 0.0
  %1893 = vmatpush1.msra.mxu0 0.0
  %1894 = vmatprep.subr.mxu0 0.0
  %1895 = vmatpush1.msra.mxu0 0.0
  %1896 = vmatprep.subr.mxu0 0.0
  %1897 = vmatpush1.msra.mxu0 0.0
  %1898 = vmatprep.subr.mxu0 0.0
  %1899 = vmatpush1.msra.mxu0 0.0
  %1900 = vmatprep.subr.mxu0 0.0
  %1901 = vmatpush1.msra.mxu0 0.0
  %1902 = vmatprep.subr.mxu0 0.0
  %1903 = vmatpush1.msra.mxu0 0.0
  %1904 = vmatprep.subr.mxu0 0.0
  %1905 = vmatpush1.msra.mxu0 0.0
  %1906 = vmatprep.subr.mxu0 0.0
  %1907 = vmatpush1.msra.mxu0 0.0
  %1908 = vmatprep.subr.mxu0 0.0
  %1909 = vmatpush1.msra.mxu0 0.0
  %1910 = vmatprep.mubr.f32.mxu0 0.0
  %1911 = vmatmul.mubr.f32.gmra.mrb[0].mxu0 %v1844
  %v1912 = vpop.f32.mrb[0].mxu0
  %v1913 = vadd.f32 0.0, %v1912
  %v1914 = vpop.f32.mrb[0].mxu0
  %1915 = vdwg.mxu0
  %s1916 = scalar_lea.vmem [#allocation2], 48
  %v1917 = vld [vmem:[%s1916] sm:$0xff]
  %1918 = vmatprep.subr.mxu0 0.0
  %1919 = vmatpush1.msra.mxu0 %v192
  %1920 = vmatprep.subr.mxu0 0.0
  %1921 = vmatpush1.msra.mxu0 %v193
  %1922 = vmatprep.subr.mxu0 0.0
  %1923 = vmatpush1.msra.mxu0 %v194
  %1924 = vmatprep.subr.mxu0 0.0
  %1925 = vmatpush1.msra.mxu0 %v195
  %1926 = vmatprep.subr.mxu0 0.0
  %1927 = vmatpush1.msra.mxu0 0.0
  %1928 = vmatprep.subr.mxu0 0.0
  %1929 = vmatpush1.msra.mxu0 0.0
  %1930 = vmatprep.subr.mxu0 0.0
  %1931 = vmatpush1.msra.mxu0 0.0
  %1932 = vmatprep.subr.mxu0 0.0
  %1933 = vmatpush1.msra.mxu0 0.0
  %1934 = vmatprep.subr.mxu0 0.0
  %1935 = vmatpush1.msra.mxu0 0.0
  %1936 = vmatprep.subr.mxu0 0.0
  %1937 = vmatpush1.msra.mxu0 0.0
  %1938 = vmatprep.subr.mxu0 0.0
  %1939 = vmatpush1.msra.mxu0 0.0
  %1940 = vmatprep.subr.mxu0 0.0
  %1941 = vmatpush1.msra.mxu0 0.0
  %1942 = vmatprep.subr.mxu0 0.0
  %1943 = vmatpush1.msra.mxu0 0.0
  %1944 = vmatprep.subr.mxu0 0.0
  %1945 = vmatpush1.msra.mxu0 0.0
  %1946 = vmatprep.subr.mxu0 0.0
  %1947 = vmatpush1.msra.mxu0 0.0
  %1948 = vmatprep.subr.mxu0 0.0
  %1949 = vmatpush1.msra.mxu0 0.0
  %1950 = vmatprep.subr.mxu0 0.0
  %1951 = vmatpush1.msra.mxu0 0.0
  %1952 = vmatprep.subr.mxu0 0.0
  %1953 = vmatpush1.msra.mxu0 0.0
  %1954 = vmatprep.subr.mxu0 0.0
  %1955 = vmatpush1.msra.mxu0 0.0
  %1956 = vmatprep.subr.mxu0 0.0
  %1957 = vmatpush1.msra.mxu0 0.0
  %1958 = vmatprep.subr.mxu0 0.0
  %1959 = vmatpush1.msra.mxu0 0.0
  %1960 = vmatprep.subr.mxu0 0.0
  %1961 = vmatpush1.msra.mxu0 0.0
  %1962 = vmatprep.subr.mxu0 0.0
  %1963 = vmatpush1.msra.mxu0 0.0
  %1964 = vmatprep.subr.mxu0 0.0
  %1965 = vmatpush1.msra.mxu0 0.0
  %1966 = vmatprep.subr.mxu0 0.0
  %1967 = vmatpush1.msra.mxu0 0.0
  %1968 = vmatprep.subr.mxu0 0.0
  %1969 = vmatpush1.msra.mxu0 0.0
  %1970 = vmatprep.subr.mxu0 0.0
  %1971 = vmatpush1.msra.mxu0 0.0
  %1972 = vmatprep.subr.mxu0 0.0
  %1973 = vmatpush1.msra.mxu0 0.0
  %1974 = vmatprep.subr.mxu0 0.0
  %1975 = vmatpush1.msra.mxu0 0.0
  %1976 = vmatprep.subr.mxu0 0.0
  %1977 = vmatpush1.msra.mxu0 0.0
  %1978 = vmatprep.subr.mxu0 0.0
  %1979 = vmatpush1.msra.mxu0 0.0
  %1980 = vmatprep.subr.mxu0 0.0
  %1981 = vmatpush1.msra.mxu0 0.0
  %1982 = vmatprep.mubr.f32.mxu0 0.0
  %1983 = vmatmul.mubr.f32.gmra.mrb[0].mxu0 %v1744
  %v1984 = vpop.f32.mrb[0].mxu0
  %v1985 = vadd.f32 0.0, %v1984
  %v1986 = vpop.f32.mrb[0].mxu0
  %1987 = vdwg.mxu0
  %v1988 = vadd.f32 %v1917, %v1985
  %v1989 = vxor.u32 %v1988, 2147483648
  %v1990 = vmul.f32 %v1989, 1.442695
  %v1991 = vpow.pop %v1990
  %v1992 = vadd.f32 %v1991, 1.0
  %v1993 = vrcp.pop %v1992
  %v1994 = vmul.f32 1.0, %v1993
  %v1995 = vtanh.pop %v1988
  %v1996 = vmul.f32 %v1994, %v1734
  %1998 = vrot.lane.b32.xlu0 %v1995, 32
  %v1999 = vpop.permute.xlu0 %1998
  %v2001 = vmul.f32 %v1994, %v1999
  %2003 = vrot.lane.b32.xlu0 %v2001, 32
  %v2004 = vpop.permute.xlu0 %2003
  %v2006 = vadd.f32 %v1996, %v2004
  %v2007 = vtanh.pop %v2006
  %2009 = vrot.lane.b32.xlu0 %v2007, 32
  %v2010 = vpop.permute.xlu0 %2009
  %v2012 = vmul.f32 %v1994, %v2010
  %2014 = vrot.lane.b32.xlu0 %v2012, 64
  %v2015 = vpop.permute.xlu0 %2014
  %v2016 = vsel %vm211, %v2015, 0
  %2018 = vmatprep.subr.mxu0 0.0
  %2019 = vmatpush1.msra.mxu0 %v196
  %2020 = vmatprep.subr.mxu0 0.0
  %2021 = vmatpush1.msra.mxu0 %v197
  %2022 = vmatprep.subr.mxu0 0.0
  %2023 = vmatpush1.msra.mxu0 %v198
  %2024 = vmatprep.subr.mxu0 0.0
  %2025 = vmatpush1.msra.mxu0 %v199
  %2026 = vmatprep.subr.mxu0 0.0
  %2027 = vmatpush1.msra.mxu0 0.0
  %2028 = vmatprep.subr.mxu0 0.0
  %2029 = vmatpush1.msra.mxu0 0.0
  %2030 = vmatprep.subr.mxu0 0.0
  %2031 = vmatpush1.msra.mxu0 0.0
  %2032 = vmatprep.subr.mxu0 0.0
  %2033 = vmatpush1.msra.mxu0 0.0
  %2034 = vmatprep.subr.mxu0 0.0
  %2035 = vmatpush1.msra.mxu0 0.0
  %2036 = vmatprep.subr.mxu0 0.0
  %2037 = vmatpush1.msra.mxu0 0.0
  %2038 = vmatprep.subr.mxu0 0.0
  %2039 = vmatpush1.msra.mxu0 0.0
  %2040 = vmatprep.subr.mxu0 0.0
  %2041 = vmatpush1.msra.mxu0 0.0
  %2042 = vmatprep.subr.mxu0 0.0
  %2043 = vmatpush1.msra.mxu0 0.0
  %2044 = vmatprep.subr.mxu0 0.0
  %2045 = vmatpush1.msra.mxu0 0.0
  %2046 = vmatprep.subr.mxu0 0.0
  %2047 = vmatpush1.msra.mxu0 0.0
  %2048 = vmatprep.subr.mxu0 0.0
  %2049 = vmatpush1.msra.mxu0 0.0
  %2050 = vmatprep.subr.mxu0 0.0
  %2051 = vmatpush1.msra.mxu0 0.0
  %2052 = vmatprep.subr.mxu0 0.0
  %2053 = vmatpush1.msra.mxu0 0.0
  %2054 = vmatprep.subr.mxu0 0.0
  %2055 = vmatpush1.msra.mxu0 0.0
  %2056 = vmatprep.subr.mxu0 0.0
  %2057 = vmatpush1.msra.mxu0 0.0
  %2058 = vmatprep.subr.mxu0 0.0
  %2059 = vmatpush1.msra.mxu0 0.0
  %2060 = vmatprep.subr.mxu0 0.0
  %2061 = vmatpush1.msra.mxu0 0.0
  %2062 = vmatprep.subr.mxu0 0.0
  %2063 = vmatpush1.msra.mxu0 0.0
  %2064 = vmatprep.subr.mxu0 0.0
  %2065 = vmatpush1.msra.mxu0 0.0
  %2066 = vmatprep.subr.mxu0 0.0
  %2067 = vmatpush1.msra.mxu0 0.0
  %2068 = vmatprep.subr.mxu0 0.0
  %2069 = vmatpush1.msra.mxu0 0.0
  %2070 = vmatprep.subr.mxu0 0.0
  %2071 = vmatpush1.msra.mxu0 0.0
  %2072 = vmatprep.subr.mxu0 0.0
  %2073 = vmatpush1.msra.mxu0 0.0
  %2074 = vmatprep.subr.mxu0 0.0
  %2075 = vmatpush1.msra.mxu0 0.0
  %2076 = vmatprep.subr.mxu0 0.0
  %2077 = vmatpush1.msra.mxu0 0.0
  %2078 = vmatprep.subr.mxu0 0.0
  %2079 = vmatpush1.msra.mxu0 0.0
  %2080 = vmatprep.subr.mxu0 0.0
  %2081 = vmatpush1.msra.mxu0 0.0
  %2082 = vmatprep.mubr.f32.mxu0 0.0
  %2083 = vmatmul.mubr.f32.gmra.mrb[0].mxu0 %v2016
  %v2084 = vpop.f32.mrb[0].mxu0
  %v2085 = vadd.f32 %v1913, %v2084
  %v2086 = vpop.f32.mrb[0].mxu0
  %2087 = vdwg.mxu0
  %v2088 = vadd.f32 %v2085, %v209
  %v2089 = vxor.u32 %v2088, 2147483648
  %v2090 = vmul.f32 %v2089, 1.442695
  %v2091 = vpow.pop %v2090
  %v2092 = vadd.f32 %v2091, 1.0
  %v2093 = vrcp.pop %v2092
  %v2094 = vmul.f32 1.0, %v2093
  %v2095 = vtanh.pop %v2088
  %v2096 = vmul.f32 %v2094, %v1834
  %2098 = vrot.lane.b32.xlu0 %v2095, 32
  %v2099 = vpop.permute.xlu0 %2098
  %v2101 = vmul.f32 %v2094, %v2099
  %2103 = vrot.lane.b32.xlu0 %v2101, 32
  %v2104 = vpop.permute.xlu0 %2103
  %v2106 = vadd.f32 %v2096, %v2104
  %v2107 = vtanh.pop %v2106
  %2109 = vrot.lane.b32.xlu0 %v2107, 32
  %v2110 = vpop.permute.xlu0 %2109
  %v2112 = vmul.f32 %v2094, %v2110
  %2114 = vrot.lane.b32.xlu0 %v2112, 64
  %v2115 = vpop.permute.xlu0 %2114
  %v2116 = vsel %vm211, %v2115, 0
  %2118 = vmatprep.subr.mxu0 0.0
  %2119 = vmatpush1.msra.mxu0 %v200
  %2120 = vmatprep.subr.mxu0 0.0
  %2121 = vmatpush1.msra.mxu0 %v201
  %2122 = vmatprep.subr.mxu0 0.0
  %2123 = vmatpush1.msra.mxu0 %v202
  %2124 = vmatprep.subr.mxu0 0.0
  %2125 = vmatpush1.msra.mxu0 %v203
  %2126 = vmatprep.subr.mxu0 0.0
  %2127 = vmatpush1.msra.mxu0 0.0
  %2128 = vmatprep.subr.mxu0 0.0
  %2129 = vmatpush1.msra.mxu0 0.0
  %2130 = vmatprep.subr.mxu0 0.0
  %2131 = vmatpush1.msra.mxu0 0.0
  %2132 = vmatprep.subr.mxu0 0.0
  %2133 = vmatpush1.msra.mxu0 0.0
  %2134 = vmatprep.subr.mxu0 0.0
  %2135 = vmatpush1.msra.mxu0 0.0
  %2136 = vmatprep.subr.mxu0 0.0
  %2137 = vmatpush1.msra.mxu0 0.0
  %2138 = vmatprep.subr.mxu0 0.0
  %2139 = vmatpush1.msra.mxu0 0.0
  %2140 = vmatprep.subr.mxu0 0.0
  %2141 = vmatpush1.msra.mxu0 0.0
  %2142 = vmatprep.subr.mxu0 0.0
  %2143 = vmatpush1.msra.mxu0 0.0
  %2144 = vmatprep.subr.mxu0 0.0
  %2145 = vmatpush1.msra.mxu0 0.0
  %2146 = vmatprep.subr.mxu0 0.0
  %2147 = vmatpush1.msra.mxu0 0.0
  %2148 = vmatprep.subr.mxu0 0.0
  %2149 = vmatpush1.msra.mxu0 0.0
  %2150 = vmatprep.subr.mxu0 0.0
  %2151 = vmatpush1.msra.mxu0 0.0
  %2152 = vmatprep.subr.mxu0 0.0
  %2153 = vmatpush1.msra.mxu0 0.0
  %2154 = vmatprep.subr.mxu0 0.0
  %2155 = vmatpush1.msra.mxu0 0.0
  %2156 = vmatprep.subr.mxu0 0.0
  %2157 = vmatpush1.msra.mxu0 0.0
  %2158 = vmatprep.subr.mxu0 0.0
  %2159 = vmatpush1.msra.mxu0 0.0
  %2160 = vmatprep.subr.mxu0 0.0
  %2161 = vmatpush1.msra.mxu0 0.0
  %2162 = vmatprep.subr.mxu0 0.0
  %2163 = vmatpush1.msra.mxu0 0.0
  %2164 = vmatprep.subr.mxu0 0.0
  %2165 = vmatpush1.msra.mxu0 0.0
  %2166 = vmatprep.subr.mxu0 0.0
  %2167 = vmatpush1.msra.mxu0 0.0
  %2168 = vmatprep.subr.mxu0 0.0
  %2169 = vmatpush1.msra.mxu0 0.0
  %2170 = vmatprep.subr.mxu0 0.0
  %2171 = vmatpush1.msra.mxu0 0.0
  %2172 = vmatprep.subr.mxu0 0.0
  %2173 = vmatpush1.msra.mxu0 0.0
  %2174 = vmatprep.subr.mxu0 0.0
  %2175 = vmatpush1.msra.mxu0 0.0
  %2176 = vmatprep.subr.mxu0 0.0
  %2177 = vmatpush1.msra.mxu0 0.0
  %2178 = vmatprep.subr.mxu0 0.0
  %2179 = vmatpush1.msra.mxu0 0.0
  %2180 = vmatprep.subr.mxu0 0.0
  %2181 = vmatpush1.msra.mxu0 0.0
  %2182 = vmatprep.mubr.f32.mxu0 0.0
  %2183 = vmatmul.mubr.f32.gmra.mrb[0].mxu0 %v2116
  %v2184 = vpop.f32.mrb[0].mxu0
  %v2185 = vadd.f32 0.0, %v2184
  %v2186 = vpop.f32.mrb[0].mxu0
  %2187 = vdwg.mxu0
  %s2188 = scalar_lea.vmem [#allocation2], 56
  %v2189 = vld [vmem:[%s2188] sm:$0xff]
  %2190 = vmatprep.subr.mxu0 0.0
  %2191 = vmatpush1.msra.mxu0 %v192
  %2192 = vmatprep.subr.mxu0 0.0
  %2193 = vmatpush1.msra.mxu0 %v193
  %2194 = vmatprep.subr.mxu0 0.0
  %2195 = vmatpush1.msra.mxu0 %v194
  %2196 = vmatprep.subr.mxu0 0.0
  %2197 = vmatpush1.msra.mxu0 %v195
  %2198 = vmatprep.subr.mxu0 0.0
  %2199 = vmatpush1.msra.mxu0 0.0
  %2200 = vmatprep.subr.mxu0 0.0
  %2201 = vmatpush1.msra.mxu0 0.0
  %2202 = vmatprep.subr.mxu0 0.0
  %2203 = vmatpush1.msra.mxu0 0.0
  %2204 = vmatprep.subr.mxu0 0.0
  %2205 = vmatpush1.msra.mxu0 0.0
  %2206 = vmatprep.subr.mxu0 0.0
  %2207 = vmatpush1.msra.mxu0 0.0
  %2208 = vmatprep.subr.mxu0 0.0
  %2209 = vmatpush1.msra.mxu0 0.0
  %2210 = vmatprep.subr.mxu0 0.0
  %2211 = vmatpush1.msra.mxu0 0.0
  %2212 = vmatprep.subr.mxu0 0.0
  %2213 = vmatpush1.msra.mxu0 0.0
  %2214 = vmatprep.subr.mxu0 0.0
  %2215 = vmatpush1.msra.mxu0 0.0
  %2216 = vmatprep.subr.mxu0 0.0
  %2217 = vmatpush1.msra.mxu0 0.0
  %2218 = vmatprep.subr.mxu0 0.0
  %2219 = vmatpush1.msra.mxu0 0.0
  %2220 = vmatprep.subr.mxu0 0.0
  %2221 = vmatpush1.msra.mxu0 0.0
  %2222 = vmatprep.subr.mxu0 0.0
  %2223 = vmatpush1.msra.mxu0 0.0
  %2224 = vmatprep.subr.mxu0 0.0
  %2225 = vmatpush1.msra.mxu0 0.0
  %2226 = vmatprep.subr.mxu0 0.0
  %2227 = vmatpush1.msra.mxu0 0.0
  %2228 = vmatprep.subr.mxu0 0.0
  %2229 = vmatpush1.msra.mxu0 0.0
  %2230 = vmatprep.subr.mxu0 0.0
  %2231 = vmatpush1.msra.mxu0 0.0
  %2232 = vmatprep.subr.mxu0 0.0
  %2233 = vmatpush1.msra.mxu0 0.0
  %2234 = vmatprep.subr.mxu0 0.0
  %2235 = vmatpush1.msra.mxu0 0.0
  %2236 = vmatprep.subr.mxu0 0.0
  %2237 = vmatpush1.msra.mxu0 0.0
  %2238 = vmatprep.subr.mxu0 0.0
  %2239 = vmatpush1.msra.mxu0 0.0
  %2240 = vmatprep.subr.mxu0 0.0
  %2241 = vmatpush1.msra.mxu0 0.0
  %2242 = vmatprep.subr.mxu0 0.0
  %2243 = vmatpush1.msra.mxu0 0.0
  %2244 = vmatprep.subr.mxu0 0.0
  %2245 = vmatpush1.msra.mxu0 0.0
  %2246 = vmatprep.subr.mxu0 0.0
  %2247 = vmatpush1.msra.mxu0 0.0
  %2248 = vmatprep.subr.mxu0 0.0
  %2249 = vmatpush1.msra.mxu0 0.0
  %2250 = vmatprep.subr.mxu0 0.0
  %2251 = vmatpush1.msra.mxu0 0.0
  %2252 = vmatprep.subr.mxu0 0.0
  %2253 = vmatpush1.msra.mxu0 0.0
  %2254 = vmatprep.mubr.f32.mxu0 0.0
  %2255 = vmatmul.mubr.f32.gmra.mrb[0].mxu0 %v2016
  %v2256 = vpop.f32.mrb[0].mxu0
  %v2257 = vadd.f32 0.0, %v2256
  %v2258 = vpop.f32.mrb[0].mxu0
  %2259 = vdwg.mxu0
  %v2260 = vadd.f32 %v2189, %v2257
  %v2261 = vxor.u32 %v2260, 2147483648
  %v2262 = vmul.f32 %v2261, 1.442695
  %v2263 = vpow.pop %v2262
  %v2264 = vadd.f32 %v2263, 1.0
  %v2265 = vrcp.pop %v2264
  %v2266 = vmul.f32 1.0, %v2265
  %v2267 = vtanh.pop %v2260
  %v2268 = vmul.f32 %v2266, %v2006
  %2270 = vrot.lane.b32.xlu0 %v2267, 32
  %v2271 = vpop.permute.xlu0 %2270
  %v2273 = vmul.f32 %v2266, %v2271
  %2275 = vrot.lane.b32.xlu0 %v2273, 32
  %v2276 = vpop.permute.xlu0 %2275
  %v2278 = vadd.f32 %v2268, %v2276
  %v2279 = vtanh.pop %v2278
  %2281 = vrot.lane.b32.xlu0 %v2279, 32
  %v2282 = vpop.permute.xlu0 %2281
  %v2284 = vmul.f32 %v2266, %v2282
  %2286 = vrot.lane.b32.xlu0 %v2284, 64
  %v2287 = vpop.permute.xlu0 %2286
  %v2288 = vsel %vm211, %v2287, 0
  %2290 = vmatprep.subr.mxu0 0.0
  %2291 = vmatpush1.msra.mxu0 %v196
  %2292 = vmatprep.subr.mxu0 0.0
  %2293 = vmatpush1.msra.mxu0 %v197
  %2294 = vmatprep.subr.mxu0 0.0
  %2295 = vmatpush1.msra.mxu0 %v198
  %2296 = vmatprep.subr.mxu0 0.0
  %2297 = vmatpush1.msra.mxu0 %v199
  %2298 = vmatprep.subr.mxu0 0.0
  %2299 = vmatpush1.msra.mxu0 0.0
  %2300 = vmatprep.subr.mxu0 0.0
  %2301 = vmatpush1.msra.mxu0 0.0
  %2302 = vmatprep.subr.mxu0 0.0
  %2303 = vmatpush1.msra.mxu0 0.0
  %2304 = vmatprep.subr.mxu0 0.0
  %2305 = vmatpush1.msra.mxu0 0.0
  %2306 = vmatprep.subr.mxu0 0.0
  %2307 = vmatpush1.msra.mxu0 0.0
  %2308 = vmatprep.subr.mxu0 0.0
  %2309 = vmatpush1.msra.mxu0 0.0
  %2310 = vmatprep.subr.mxu0 0.0
  %2311 = vmatpush1.msra.mxu0 0.0
  %2312 = vmatprep.subr.mxu0 0.0
  %2313 = vmatpush1.msra.mxu0 0.0
  %2314 = vmatprep.subr.mxu0 0.0
  %2315 = vmatpush1.msra.mxu0 0.0
  %2316 = vmatprep.subr.mxu0 0.0
  %2317 = vmatpush1.msra.mxu0 0.0
  %2318 = vmatprep.subr.mxu0 0.0
  %2319 = vmatpush1.msra.mxu0 0.0
  %2320 = vmatprep.subr.mxu0 0.0
  %2321 = vmatpush1.msra.mxu0 0.0
  %2322 = vmatprep.subr.mxu0 0.0
  %2323 = vmatpush1.msra.mxu0 0.0
  %2324 = vmatprep.subr.mxu0 0.0
  %2325 = vmatpush1.msra.mxu0 0.0
  %2326 = vmatprep.subr.mxu0 0.0
  %2327 = vmatpush1.msra.mxu0 0.0
  %2328 = vmatprep.subr.mxu0 0.0
  %2329 = vmatpush1.msra.mxu0 0.0
  %2330 = vmatprep.subr.mxu0 0.0
  %2331 = vmatpush1.msra.mxu0 0.0
  %2332 = vmatprep.subr.mxu0 0.0
  %2333 = vmatpush1.msra.mxu0 0.0
  %2334 = vmatprep.subr.mxu0 0.0
  %2335 = vmatpush1.msra.mxu0 0.0
  %2336 = vmatprep.subr.mxu0 0.0
  %2337 = vmatpush1.msra.mxu0 0.0
  %2338 = vmatprep.subr.mxu0 0.0
  %2339 = vmatpush1.msra.mxu0 0.0
  %2340 = vmatprep.subr.mxu0 0.0
  %2341 = vmatpush1.msra.mxu0 0.0
  %2342 = vmatprep.subr.mxu0 0.0
  %2343 = vmatpush1.msra.mxu0 0.0
  %2344 = vmatprep.subr.mxu0 0.0
  %2345 = vmatpush1.msra.mxu0 0.0
  %2346 = vmatprep.subr.mxu0 0.0
  %2347 = vmatpush1.msra.mxu0 0.0
  %2348 = vmatprep.subr.mxu0 0.0
  %2349 = vmatpush1.msra.mxu0 0.0
  %2350 = vmatprep.subr.mxu0 0.0
  %2351 = vmatpush1.msra.mxu0 0.0
  %2352 = vmatprep.subr.mxu0 0.0
  %2353 = vmatpush1.msra.mxu0 0.0
  %2354 = vmatprep.mubr.f32.mxu0 0.0
  %2355 = vmatmul.mubr.f32.gmra.mrb[0].mxu0 %v2288
  %v2356 = vpop.f32.mrb[0].mxu0
  %v2357 = vadd.f32 %v2185, %v2356
  %v2358 = vpop.f32.mrb[0].mxu0
  %2359 = vdwg.mxu0
  %v2360 = vadd.f32 %v2357, %v209
  %v2361 = vxor.u32 %v2360, 2147483648
  %v2362 = vmul.f32 %v2361, 1.442695
  %v2363 = vpow.pop %v2362
  %v2364 = vadd.f32 %v2363, 1.0
  %v2365 = vrcp.pop %v2364
  %v2366 = vmul.f32 1.0, %v2365
  %v2367 = vtanh.pop %v2360
  %v2368 = vmul.f32 %v2366, %v2106
  %2370 = vrot.lane.b32.xlu0 %v2367, 32
  %v2371 = vpop.permute.xlu0 %2370
  %v2373 = vmul.f32 %v2366, %v2371
  %2375 = vrot.lane.b32.xlu0 %v2373, 32
  %v2376 = vpop.permute.xlu0 %2375
  %v2378 = vadd.f32 %v2368, %v2376
  %v2379 = vtanh.pop %v2378
  %2381 = vrot.lane.b32.xlu0 %v2379, 32
  %v2382 = vpop.permute.xlu0 %2381
  %v2384 = vmul.f32 %v2366, %v2382
  %v2385 = vld [vmem:[%s7] sm:$0xff]
  %v2386 = vld [vmem:[%s7 + $0x8] sm:$0xff]
  %v2387 = vld [vmem:[%s7 + $0x10] sm:$0xff]
  %v2388 = vld [vmem:[%s7 + $0x18] sm:$0xff]
  %v2389 = vld [vmem:[#allocation3] sm:$0x1]
  %v2391 = vlaneseq
  %v2392 = vshrl.u32 %v2391, 7
  %v2393 = vsub.s32 0, %v2392
  %v2394 = vrot.slane %v2389, %v2393
  %2397 = vrot.lane.b32.xlu0 %v2384, 64
  %v2398 = vpop.permute.xlu0 %2397
  %v2399 = vsel %vm211, %v2398, 0
  %2401 = vmatprep.subr.mxu0 0.0
  %2402 = vmatpush1.msra.mxu0 %v2385
  %2403 = vmatprep.subr.mxu0 0.0
  %2404 = vmatpush1.msra.mxu0 %v2386
  %2405 = vmatprep.subr.mxu0 0.0
  %2406 = vmatpush1.msra.mxu0 %v2387
  %2407 = vmatprep.subr.mxu0 0.0
  %2408 = vmatpush1.msra.mxu0 %v2388
  %2409 = vmatprep.subr.mxu0 0.0
  %2410 = vmatpush1.msra.mxu0 0.0
  %2411 = vmatprep.subr.mxu0 0.0
  %2412 = vmatpush1.msra.mxu0 0.0
  %2413 = vmatprep.subr.mxu0 0.0
  %2414 = vmatpush1.msra.mxu0 0.0
  %2415 = vmatprep.subr.mxu0 0.0
  %2416 = vmatpush1.msra.mxu0 0.0
  %2417 = vmatprep.subr.mxu0 0.0
  %2418 = vmatpush1.msra.mxu0 0.0
  %2419 = vmatprep.subr.mxu0 0.0
  %2420 = vmatpush1.msra.mxu0 0.0
  %2421 = vmatprep.subr.mxu0 0.0
  %2422 = vmatpush1.msra.mxu0 0.0
  %2423 = vmatprep.subr.mxu0 0.0
  %2424 = vmatpush1.msra.mxu0 0.0
  %2425 = vmatprep.subr.mxu0 0.0
  %2426 = vmatpush1.msra.mxu0 0.0
  %2427 = vmatprep.subr.mxu0 0.0
  %2428 = vmatpush1.msra.mxu0 0.0
  %2429 = vmatprep.subr.mxu0 0.0
  %2430 = vmatpush1.msra.mxu0 0.0
  %2431 = vmatprep.subr.mxu0 0.0
  %2432 = vmatpush1.msra.mxu0 0.0
  %2433 = vmatprep.subr.mxu0 0.0
  %2434 = vmatpush1.msra.mxu0 0.0
  %2435 = vmatprep.subr.mxu0 0.0
  %2436 = vmatpush1.msra.mxu0 0.0
  %2437 = vmatprep.subr.mxu0 0.0
  %2438 = vmatpush1.msra.mxu0 0.0
  %2439 = vmatprep.subr.mxu0 0.0
  %2440 = vmatpush1.msra.mxu0 0.0
  %2441 = vmatprep.subr.mxu0 0.0
  %2442 = vmatpush1.msra.mxu0 0.0
  %2443 = vmatprep.subr.mxu0 0.0
  %2444 = vmatpush1.msra.mxu0 0.0
  %2445 = vmatprep.subr.mxu0 0.0
  %2446 = vmatpush1.msra.mxu0 0.0
  %2447 = vmatprep.subr.mxu0 0.0
  %2448 = vmatpush1.msra.mxu0 0.0
  %2449 = vmatprep.subr.mxu0 0.0
  %2450 = vmatpush1.msra.mxu0 0.0
  %2451 = vmatprep.subr.mxu0 0.0
  %2452 = vmatpush1.msra.mxu0 0.0
  %2453 = vmatprep.subr.mxu0 0.0
  %2454 = vmatpush1.msra.mxu0 0.0
  %2455 = vmatprep.subr.mxu0 0.0
  %2456 = vmatpush1.msra.mxu0 0.0
  %2457 = vmatprep.subr.mxu0 0.0
  %2458 = vmatpush1.msra.mxu0 0.0
  %2459 = vmatprep.subr.mxu0 0.0
  %2460 = vmatpush1.msra.mxu0 0.0
  %2461 = vmatprep.subr.mxu0 0.0
  %2462 = vmatpush1.msra.mxu0 0.0
  %2463 = vmatprep.subr.mxu0 0.0
  %2464 = vmatpush1.msra.mxu0 0.0
  %2465 = vmatprep.mubr.f32.mxu0 0.0
  %2466 = vmatmul.mubr.f32.gmra.mrb[0].mxu0 %v2399
  %v2467 = vpop.f32.mrb[0].mxu0
  %v2468 = vadd.f32 %v2394, %v2467
  %v2469 = vpop.f32.mrb[0].mxu0
  %2470 = vdwg.mxu0
  %vm2471 = vcmask 7168
  %2472 = vst.msk [vmem:[%s9] sm:$0xff] %vm2471, %v2468
  // Predicated region
  $region38: #{tpu_custom_call.1} parent=0 // pred_check
    _
  $region39: #{tpu_custom_call.1} parent=0 // pred_check_branch
    %2474 = sbr.rel (0) target = $region41
  $region40: #{tpu_custom_call.1} parent=0 // pred_region
    _
  $region41: #{tpu_custom_call.1} parent=0 // pred_fallthru
    _
  // Predicated region
  $region42: #{tpu_custom_call.1} parent=0 // pred_check
    _
  $region43: #{tpu_custom_call.1} parent=0 // pred_check_branch
    %2476 = sbr.rel (0) target = $region45
  $region44: #{tpu_custom_call.1} parent=0 // pred_region
    _
  $region45: #{tpu_custom_call.1} parent=0 // pred_fallthru
    _

</llo_original>
